<compile_context>
chip_gen: v7x
topology: tpu7x:2x2x1
jax: 0.10.0
libtpu: 0.0.40
codegen_flags: <defaults>
</compile_context>

<pallas_src>
import numpy as np
import jax
import jax.numpy as jnp
from jax.experimental import pallas as pl
from jax.experimental.pallas import tpu as pltpu

# ----- deterministic stand-in for the `args` Namespace -----
TYPE_OF_DISTANCE = "cosine"      # hot path: -(x_norm @ x_norm.T) on the MXU
TYPE_OF_TRIPLETS = "semi-hard"   # one of: easy / hard / semi-hard / all
EPSILON_INIT = 0.1               # overwritten by update(delta, 'ap_an') before use
BETA_INIT = 0.0                  # overwritten by update(an_dist, 'an') before use
K_DELTA = 2.0
K_AN = 2.0
CALC_LOSS_AN = True
MATMUL_IN_BF16 = False           # optional bf16 MXU path (not bit-exact thresholds)

_VMEM_LIMIT = 48 * 1024 * 1024   # safe on v5e/v6e (128 MiB) and v7x (64 MiB)


# --------------------------------------------------------------------------
# Pass 1: distance matrix, epsilon (factorized O(N^2) reduction), beta, a-n mask
# Padded rows carry label -1 and are excluded via validity predicates.
# --------------------------------------------------------------------------
def pairwise_stats_kernel(x_ref, lab_c_ref, lab_r_ref,
                          mat_ref, an_ref, eps_ref, beta_ref):
    x = x_ref[...]                                   # (N, D) f32 (padded rows are 0)
    n = x.shape[0]

    # F.normalize(p=2, dim=1): x / max(||x||,1e-12) == x * rsqrt(max(||x||^2,1e-24))
    sq = jnp.sum(x * x, axis=-1, keepdims=True)
    xn = x * jax.lax.rsqrt(jnp.maximum(sq, 1e-24))   # padded rows stay exactly 0

    # cosine "distance" = -(xn @ xn.T)
    if MATMUL_IN_BF16:
        mat = -jax.lax.dot_general(xn.astype(jnp.bfloat16), xn.astype(jnp.bfloat16),
                                   (((1,), (1,)), ((), ())),
                                   preferred_element_type=jnp.float32)
    else:
        mat = -jax.lax.dot_general(xn, xn, (((1,), (1,)), ((), ())),
                                   preferred_element_type=jnp.float32)
    mat_ref[...] = mat

    lab_c = lab_c_ref[...]                           # (N, 1) int32 (-1 = padding)
    lab_r = lab_r_ref[...]                           # (1, N) int32
    valid_c = lab_c >= 0
    valid_r = lab_r >= 0
    row_i = jax.lax.broadcasted_iota(jnp.int32, (n, n), 0)
    col_i = jax.lax.broadcasted_iota(jnp.int32, (n, n), 1)

    sames_raw = lab_c == lab_r
    sames = jnp.logical_and(jnp.logical_and(sames_raw, row_i != col_i),
                            jnp.logical_and(valid_c, valid_r))
    diffs = jnp.logical_and(jnp.logical_not(sames_raw),
                            jnp.logical_and(valid_c, valid_r))

    one = jnp.float32(1.0)
    zero = jnp.float32(0.0)

    # epsilon = clip(mean over valid triplets of (mat[a,n]-mat[a,p]) / k_delta, 0, .5)
    # factorized with identities (no diffs_f / an-masked (N,N) temporaries):
    sames_f = jnp.where(sames, one, zero)                        # (N, N) — reused twice
    pos_cnt = jnp.sum(sames_f, axis=1, keepdims=True)            # (N, 1)
    col_pos = jnp.sum(sames_f, axis=0, keepdims=True)            # (1, N)
    n_valid = jnp.sum(jnp.where(valid_r, one, zero))             # scalar
    neg_cnt = n_valid - one - pos_cnt          # garbage on pad rows, but ×0 below
    ap_sum = jnp.sum(jnp.where(sames, mat, zero), axis=1, keepdims=True)
    diag = -jnp.sum(xn * xn, axis=1, keepdims=True)              # mat[a,a] (≈ -1 valid)
    row_sum = jnp.sum(mat, axis=1, keepdims=True)                # pad cols are exactly 0
    an_sum = row_sum - ap_sum - diag
    total = jnp.sum(pos_cnt * an_sum - neg_cnt * ap_sum)
    cnt = jnp.sum(pos_cnt * neg_cnt)
    # TODO(synk): f32 accumulation order differs from the torch N^3 reduction;
    # use pairwise/Kahan accumulation if bit-level epsilon parity matters at huge N.
    epsilon = jnp.clip(total / jnp.maximum(cnt, one) / K_DELTA, 0.0, 0.5)
    eps_ref[...] = jnp.full((1, 1), epsilon, dtype=jnp.float32)

    # unique_filter(anchor_idx, negative_idx): unordered unique (i < j) pairs.
    # (i, j) appears iff labels differ and at least one of i, j has a positive.
    hp_c = pos_cnt > zero                                        # (N, 1)
    hp_r = col_pos > zero                                        # (1, N)
    pair_valid = jnp.logical_and(diffs, jnp.logical_or(hp_c, hp_r))
    pair_valid = jnp.logical_and(pair_valid, col_i > row_i)      # keep i < j only
    pv_cnt = jnp.sum(jnp.where(pair_valid, one, zero))
    pv_sum = jnp.sum(jnp.where(pair_valid, mat, zero))
    an_mean = pv_sum / jnp.maximum(pv_cnt, one)
    beta = 1.0 + (-an_mean - 1.0) / K_AN                         # update(an_dist, 'an')
    beta_ref[...] = jnp.full((1, 1), beta, dtype=jnp.float32)
    an_ref[...] = jnp.logical_and(pair_valid, -mat >= beta).astype(jnp.int8)


# --------------------------------------------------------------------------
# Pass 2: triplet mask on a 2-D (anchor, positive) grid.  Band compare of
# mat[a, n] against per-(a,p) thresholds; no (TA,N,N) delta materialization.
# ~4 VALU ops per int8 output element; lane-dense (N multiple of 128) stores.
# --------------------------------------------------------------------------
def triplet_mask_kernel(eps_ref, mat_ap_ref, mat_an_ref,
                        lab_a_ref, lab_p_ref, lab_n_ref, trip_ref):
    mat_ap = mat_ap_ref[...]             # (TA, TP) f32: anchor-positive distances
    mat_an = mat_an_ref[...]             # (TA, N)  f32: anchor-negative row
    lab_a = lab_a_ref[...]               # (TA, 1) int32
    lab_p = lab_p_ref[...]               # (1, TP) int32
    lab_n = lab_n_ref[...]               # (1, N)  int32
    ta, tp = mat_ap.shape
    n = mat_an.shape[1]
    eps = eps_ref[0, 0]                  # scalar from SMEM

    a0 = pl.program_id(0) * ta           # global anchor offset of this tile
    p0 = pl.program_id(1) * tp           # global positive offset of this tile
    row_g = a0 + jax.lax.broadcasted_iota(jnp.int32, (ta, tp), 0)
    col_g = p0 + jax.lax.broadcasted_iota(jnp.int32, (ta, tp), 1)

    valid_a = lab_a >= 0                                        # (TA, 1)
    # sames[a,p]: same label, a != p, anchor valid (pad labels -1 never match valid)
    sames_ap = jnp.logical_and(jnp.logical_and(lab_a == lab_p, row_g != col_g),
                               valid_a)                         # (TA, TP)
    # diffs[a,n] pre-cast to int8 once per tile; folded into the final select.
    diffs_i8 = jnp.logical_and(jnp.logical_and(lab_a != lab_n, valid_a),
                               lab_n >= 0).astype(jnp.int8)     # (TA, N)

    BIG = jnp.float32(3.0e38)
    an3 = mat_an[:, None, :]                                     # (TA, 1, N)

    # delta = mat[a,n] - mat[a,p]; thresholds are per-(a,p), validity folded in.
    # NOTE: compares mat_an against mat_ap+eps instead of (mat_an-mat_ap) vs eps;
    # identical up to one f32 ulp at the threshold.
    if TYPE_OF_TRIPLETS == "easy":          # delta > eps
        thr = jnp.where(sames_ap, mat_ap + eps, BIG)             # (TA, TP)
        in_band = an3 > thr[:, :, None]
    elif TYPE_OF_TRIPLETS == "hard":        # delta <= eps  &  delta <= 0
        hi = jnp.where(sames_ap, mat_ap + jnp.minimum(eps, 0.0), -BIG)
        in_band = an3 <= hi[:, :, None]
    elif TYPE_OF_TRIPLETS == "semi-hard":   # 0 < delta <= eps
        lo = jnp.where(sames_ap, mat_ap, BIG)                    # empty band if !sames
        hi = mat_ap + eps
        in_band = jnp.logical_and(an3 > lo[:, :, None], an3 <= hi[:, :, None])
    else:                                    # "all": delta <= eps
        hi = jnp.where(sames_ap, mat_ap + eps, -BIG)
        in_band = an3 <= hi[:, :, None]

    trip_ref[...] = jnp.where(in_band, diffs_i8[:, None, :], jnp.int8(0))


def _choose_pass2_tiles(n_pad, block_budget_bytes=16 << 20):
    """Pick (TA, TP) for the pass-2 (anchor, positive) grid.

    Per grid step the dominant VMEM users are the double-buffered (TA,TP,N)
    int8 output block (2 B/elem) plus ~2 B/elem of live band-compare
    temporaries, so budget ~4 B per TA*TP*N element and keep blocks well under
    the 48 MiB scoped limit (v7x physical VMEM is only 64 MiB).
    Constraints: TP must be a multiple of 128 dividing n_pad (lane dim of the
    (TA,TP) mat block); TA a multiple of 8 dividing n_pad."""
    per_elem_bytes = 4
    max_ap = max(8 * 128, block_budget_bytes // (per_elem_bytes * n_pad))
    tp_cands = [d for d in range(128, n_pad + 1, 128) if n_pad % d == 0]
    tp = max([d for d in tp_cands if 8 * d <= max_ap] or [128])
    ta_cands = [d for d in range(8, n_pad + 1, 8) if n_pad % d == 0]
    ta = max([d for d in ta_cands if d * tp <= max_ap] or [8])
    return ta, tp


def ada_triplet_miner(logits, labels, anchor_tile=None, positive_tile=None):
    """Returns padded (n_pad >= n, multiple of 128) dense outputs:
    mat (n_pad,n_pad) f32, trip_mask (n_pad,n_pad,n_pad) i8, an_mask (n_pad,n_pad) i8,
    eps (1,1) f32, beta (1,1) f32.  Padded entries of the masks are always 0, so
    np.nonzero on the padded masks recovers exactly the PyTorch index tuples."""
    n, d = logits.shape
    n_pad = max(128, ((n + 127) // 128) * 128)       # lane-dense last dims everywhere

    x = jnp.zeros((n_pad, d), jnp.float32).at[:n, :].set(logits.astype(jnp.float32))
    lab = jnp.full((n_pad,), -1, dtype=jnp.int32).at[:n].set(labels.astype(jnp.int32))
    lab_c = lab.reshape(n_pad, 1)
    lab_r = lab.reshape(1, n_pad)

    vmem = pl.BlockSpec(memory_space=pltpu.MemorySpace.VMEM)

    # ---- pass 1: O(N^2) stats (single VMEM-resident call) ----
    mat, an_mask, eps, beta = pl.pallas_call(
        pairwise_stats_kernel,
        out_shape=(
            jax.ShapeDtypeStruct((n_pad, n_pad), jnp.float32),   # distance matrix
            jax.ShapeDtypeStruct((n_pad, n_pad), jnp.int8),      # selected a-n pairs
            jax.ShapeDtypeStruct((1, 1), jnp.float32),           # updated epsilon
            jax.ShapeDtypeStruct((1, 1), jnp.float32),           # updated beta
        ),
        in_specs=[vmem, vmem, vmem],
        out_specs=(vmem, vmem, vmem, vmem),
        compiler_params=pltpu.CompilerParams(vmem_limit_bytes=_VMEM_LIMIT),
    )(x, lab_c, lab_r)

    # ---- pass 2: triplet mask on a 2-D (anchor, positive) grid ----
    ta, tp = _choose_pass2_tiles(n_pad)
    if anchor_tile is not None:
        ta = anchor_tile
    if positive_tile is not None:
        tp = positive_tile
    grid = (n_pad // ta, n_pad // tp)

    trip_mask = pl.pallas_call(
        triplet_mask_kernel,
        out_shape=jax.ShapeDtypeStruct((n_pad, n_pad, n_pad), jnp.int8),
        grid=grid,
        in_specs=[
            pl.BlockSpec(memory_space=pltpu.MemorySpace.SMEM),    # epsilon scalar
            pl.BlockSpec((ta, tp), lambda a, p: (a, p)),          # mat[a, p] sub-tile
            pl.BlockSpec((ta, n_pad), lambda a, p: (a, 0)),       # mat[a, :] row (negs)
            pl.BlockSpec((ta, 1), lambda a, p: (a, 0)),           # anchor labels
            pl.BlockSpec((1, tp), lambda a, p: (0, p)),           # positive labels
            pl.BlockSpec((1, n_pad), lambda a, p: (0, 0)),        # all labels (resident)
        ],
        out_specs=pl.BlockSpec((ta, tp, n_pad), lambda a, p: (a, p, 0)),
        compiler_params=pltpu.CompilerParams(
            dimension_semantics=("parallel", "arbitrary"),        # 2 TCs on v7x
            vmem_limit_bytes=_VMEM_LIMIT,
        ),
    )(eps, mat, mat, lab_c, lab_r, lab_r)

    if not CALC_LOSS_AN:
        an_mask, beta = None, None   # matches torch path (an_pairs = None)
    return mat, trip_mask, an_mask, eps, beta


if __name__ == "__main__":
    key = jax.random.PRNGKey(0)
    N, D = 8, 32
    logits = jax.random.normal(key, (N, D), dtype=jnp.float32)
    labels = jnp.array([0, 0, 1, 1, 2, 2, 3, 3], dtype=jnp.int32)

    mat_p, trip_p, an_p, eps, beta = ada_triplet_miner(logits, labels)
    jax.block_until_ready((mat_p, trip_p, an_p, eps, beta))

    mat_full = np.asarray(mat_p)
    tm_full = np.asarray(trip_p)
    am_full = np.asarray(an_p)
    mat_np = mat_full[:N, :N]
    tm = tm_full[:N, :N, :N]
    am = am_full[:N, :N]
    eps_v = float(np.asarray(eps)[0, 0])
    beta_v = float(np.asarray(beta)[0, 0])

    # Padded entries of the dense masks must all be zero.
    assert int(tm_full.sum()) == int(tm.sum())
    assert int(am_full.sum()) == int(am.sum())

    # Recover the PyTorch-style variable-length index tuples on host.
    triplets = np.nonzero(tm)          # (anchor_idx, positive_idx, negative_idx)
    an_pairs = np.nonzero(am)          # (idx0, idx1) with idx0 < idx1

    # ---- numpy reference for the matrix / scalar values ----
    x = np.asarray(logits, dtype=np.float32)
    lab = np.asarray(labels)
    xn = x / np.maximum(np.linalg.norm(x, axis=1, keepdims=True), 1e-12)
    ref_mat = -(xn @ xn.T)
    sames = (lab[:, None] == lab[None, :]).astype(np.int32)
    diffs = 1 - sames
    np.fill_diagonal(sames, 0)
    valid = sames[:, :, None] * diffs[:, None, :]
    delta = ref_mat[:, None, :] - ref_mat[:, :, None]
    ref_eps = float(np.clip((valid * delta).sum() / valid.sum() / K_DELTA, 0.0, 0.5))
    has_pos = sames.sum(1) > 0
    pv = (diffs.astype(bool)
          & (has_pos[:, None] | has_pos[None, :])
          & (np.arange(N)[None, :] > np.arange(N)[:, None]))
    ref_beta = float(1.0 + (-(ref_mat[pv].mean()) - 1.0) / K_AN)

    assert np.allclose(mat_np, ref_mat, atol=1e-5)
    assert abs(eps_v - ref_eps) < 1e-5
    assert abs(beta_v - ref_beta) < 1e-5

    # ---- exact mask-logic check, built from the kernel's own mat / eps / beta
    # mirroring the kernel's f32 band-compare form (mat_an vs mat_ap + eps) ----
    eps_f32 = np.float32(eps_v)
    an3 = mat_np[:, None, :]                       # f32 (A, 1, N)
    lo3 = mat_np[:, :, None]                       # f32 (A, P, 1)
    hi3 = (mat_np + eps_f32)[:, :, None]           # f32 (A, P, 1)
    kcond = (an3 > lo3) & (an3 <= hi3)             # semi-hard band
    ref_trip = ((valid > 0) & kcond).astype(np.int8)
    ref_an = (pv & (-mat_np >= np.float32(beta_v))).astype(np.int8)
    assert np.array_equal(tm, ref_trip)
    assert np.array_equal(am, ref_an)

    print("KERNEL_OK")
</pallas_src>

<mosaic_0001>
module attributes {stable_mosaic.version = 11 : i64} {
  func.func @pairwise_stats_kernel(%arg0: memref<128x32xf32, #tpu.memory_space<vmem>>, %arg1: memref<128x1xi32, #tpu.memory_space<vmem>>, %arg2: memref<1x128xi32, #tpu.memory_space<vmem>>, %arg3: memref<128x128xf32, #tpu.memory_space<vmem>>, %arg4: memref<128x128xi8, #tpu.memory_space<vmem>>, %arg5: memref<1x1xf32, #tpu.memory_space<vmem>>, %arg6: memref<1x1xf32, #tpu.memory_space<vmem>>) attributes {dimension_semantics = [], scalar_prefetch = 0 : i64, scratch_operands = 0 : i64, tpu.core_type = #tpu.core_type<tc>} {
    %c0 = arith.constant 0 : index
    %c0_0 = arith.constant 0 : index
    %0 = vector.load %arg0[%c0, %c0_0] : memref<128x32xf32, #tpu.memory_space<vmem>>, vector<128x32xf32>
    %1 = arith.mulf %0, %0 : vector<128x32xf32>
    %cst = arith.constant dense<0.000000e+00> : vector<128xf32>
    %2 = vector.multi_reduction <add>, %1, %cst [1] : vector<128x32xf32> to vector<128xf32>
    %3 = vector.shape_cast %2 : vector<128xf32> to vector<128x1xf32>
    %cst_1 = arith.constant 1.000000e-24 : f32
    %4 = vector.broadcast %cst_1 : f32 to vector<128x1xf32>
    %5 = arith.maximumf %3, %4 : vector<128x1xf32>
    %6 = math.rsqrt %5 : vector<128x1xf32>
    %7 = vector.broadcast %6 : vector<128x1xf32> to vector<128x32xf32>
    %8 = arith.mulf %0, %7 : vector<128x32xf32>
    %cst_2 = arith.constant dense<0.000000e+00> : vector<128x128xf32>
    %9 = tpu.matmul %8, %8, %cst_2 {dimension_numbers = #tpu.dot_dimension_numbers<[1], [1], [0], [0], [0, 0, 1, 0], [], []>} : vector<128x32xf32>, vector<128x32xf32>, vector<128x128xf32> -> vector<128x128xf32>
    %cst_3 = arith.constant 0.000000e+00 : f32
    %10 = vector.broadcast %cst_3 : f32 to vector<128x128xf32>
    %11 = arith.subf %10, %9 : vector<128x128xf32>
    %c0_4 = arith.constant 0 : index
    %c0_5 = arith.constant 0 : index
    %12 = vector.load %arg3[%c0_4, %c0_5] : memref<128x128xf32, #tpu.memory_space<vmem>>, vector<128x128xf32>
    tpu.vector_store %arg3[%c0_4, %c0_5], %11 {strides = array<i32>} : memref<128x128xf32, #tpu.memory_space<vmem>>, vector<128x128xf32>,
    %c0_6 = arith.constant 0 : index
    %c0_7 = arith.constant 0 : index
    %13 = vector.load %arg1[%c0_6, %c0_7] : memref<128x1xi32, #tpu.memory_space<vmem>>, vector<128x1xi32>
    %c0_8 = arith.constant 0 : index
    %c0_9 = arith.constant 0 : index
    %14 = vector.load %arg2[%c0_8, %c0_9] : memref<1x128xi32, #tpu.memory_space<vmem>>, vector<1x128xi32>
    %c0_i32 = arith.constant 0 : i32
    %15 = vector.broadcast %c0_i32 : i32 to vector<128x1xi32>
    %16 = arith.cmpi sge, %13, %15 : vector<128x1xi32>
    %c0_i32_10 = arith.constant 0 : i32
    %17 = vector.broadcast %c0_i32_10 : i32 to vector<1x128xi32>
    %18 = arith.cmpi sge, %14, %17 : vector<1x128xi32>
    %19 = tpu.iota {dimensions = array<i32: 0>} : vector<128x128xi32>
    %20 = tpu.iota {dimensions = array<i32: 1>} : vector<128x128xi32>
    %21 = vector.broadcast %13 : vector<128x1xi32> to vector<128x128xi32>
    %22 = vector.broadcast %14 : vector<1x128xi32> to vector<128x128xi32>
    %23 = arith.cmpi eq, %21, %22 : vector<128x128xi32>
    %24 = arith.cmpi ne, %19, %20 : vector<128x128xi32>
    %25 = arith.andi %23, %24 : vector<128x128xi1>
    %26 = vector.broadcast %16 : vector<128x1xi1> to vector<128x128xi1>
    %27 = vector.broadcast %18 : vector<1x128xi1> to vector<128x128xi1>
    %28 = arith.andi %26, %27 : vector<128x128xi1>
    %29 = arith.andi %25, %28 : vector<128x128xi1>
    %cst_11 = arith.constant dense<true> : vector<128x128xi1>
    %30 = arith.xori %23, %cst_11 : vector<128x128xi1>
    %31 = vector.broadcast %16 : vector<128x1xi1> to vector<128x128xi1>
    %32 = vector.broadcast %18 : vector<1x128xi1> to vector<128x128xi1>
    %33 = arith.andi %31, %32 : vector<128x128xi1>
    %34 = arith.andi %30, %33 : vector<128x128xi1>
    %cst_12 = arith.constant 1.000000e+00 : f32
    %cst_13 = arith.constant 0.000000e+00 : f32
    %35 = vector.broadcast %cst_12 : f32 to vector<128x128xf32>
    %36 = vector.broadcast %cst_13 : f32 to vector<128x128xf32>
    %37 = arith.select %29, %35, %36 : vector<128x128xi1>, vector<128x128xf32>
    %cst_14 = arith.constant dense<0.000000e+00> : vector<128xf32>
    %38 = vector.multi_reduction <add>, %37, %cst_14 [1] : vector<128x128xf32> to vector<128xf32>
    %39 = vector.shape_cast %38 : vector<128xf32> to vector<128x1xf32>
    %cst_15 = arith.constant dense<0.000000e+00> : vector<128xf32>
    %40 = vector.multi_reduction <add>, %37, %cst_15 [0] : vector<128x128xf32> to vector<128xf32>
    %41 = vector.shape_cast %40 : vector<128xf32> to vector<1x128xf32>
    %cst_16 = arith.constant 1.000000e+00 : f32
    %cst_17 = arith.constant 0.000000e+00 : f32
    %42 = vector.broadcast %cst_16 : f32 to vector<1x128xf32>
    %43 = vector.broadcast %cst_17 : f32 to vector<1x128xf32>
    %44 = arith.select %18, %42, %43 : vector<1x128xi1>, vector<1x128xf32>
    %45 = vector.shape_cast %44 : vector<1x128xf32> to vector<1x1x128xf32>
    %cst_18 = arith.constant dense<0.000000e+00> : vector<1xf32>
    %46 = vector.multi_reduction <add>, %45, %cst_18 [1, 2] : vector<1x1x128xf32> to vector<1xf32>
    %47 = vector.shape_cast %46 : vector<1xf32> to vector<1x1x1xf32>
    %48 = vector.extract %47[0, 0, 0] : f32 from vector<1x1x1xf32>
    %cst_19 = arith.constant 1.000000e+00 : f32
    %49 = arith.subf %48, %cst_19 : f32
    %50 = vector.broadcast %49 : f32 to vector<128x1xf32>
    %51 = arith.subf %50, %39 : vector<128x1xf32>
    %cst_20 = arith.constant 0.000000e+00 : f32
    %52 = vector.broadcast %cst_20 : f32 to vector<128x128xf32>
    %53 = arith.select %29, %11, %52 : vector<128x128xi1>, vector<128x128xf32>
    %cst_21 = arith.constant dense<0.000000e+00> : vector<128xf32>
    %54 = vector.multi_reduction <add>, %53, %cst_21 [1] : vector<128x128xf32> to vector<128xf32>
    %55 = vector.shape_cast %54 : vector<128xf32> to vector<128x1xf32>
    %56 = arith.mulf %8, %8 : vector<128x32xf32>
    %cst_22 = arith.constant dense<0.000000e+00> : vector<128xf32>
    %57 = vector.multi_reduction <add>, %56, %cst_22 [1] : vector<128x32xf32> to vector<128xf32>
    %58 = vector.shape_cast %57 : vector<128xf32> to vector<128x1xf32>
    %cst_23 = arith.constant 0.000000e+00 : f32
    %59 = vector.broadcast %cst_23 : f32 to vector<128x1xf32>
    %60 = arith.subf %59, %58 : vector<128x1xf32>
    %cst_24 = arith.constant dense<0.000000e+00> : vector<128xf32>
    %61 = vector.multi_reduction <add>, %11, %cst_24 [1] : vector<128x128xf32> to vector<128xf32>
    %62 = vector.shape_cast %61 : vector<128xf32> to vector<128x1xf32>
    %63 = arith.subf %62, %55 : vector<128x1xf32>
    %64 = arith.subf %63, %60 : vector<128x1xf32>
    %65 = arith.mulf %39, %64 : vector<128x1xf32>
    %66 = arith.mulf %51, %55 : vector<128x1xf32>
    %67 = arith.subf %65, %66 : vector<128x1xf32>
    %68 = vector.shape_cast %67 : vector<128x1xf32> to vector<1x128x1xf32>
    %cst_25 = arith.constant dense<0.000000e+00> : vector<1xf32>
    %69 = vector.multi_reduction <add>, %68, %cst_25 [1, 2] : vector<1x128x1xf32> to vector<1xf32>
    %70 = vector.shape_cast %69 : vector<1xf32> to vector<1x1x1xf32>
    %71 = vector.extract %70[0, 0, 0] : f32 from vector<1x1x1xf32>
    %72 = arith.mulf %39, %51 : vector<128x1xf32>
    %73 = vector.shape_cast %72 : vector<128x1xf32> to vector<1x128x1xf32>
    %cst_26 = arith.constant dense<0.000000e+00> : vector<1xf32>
    %74 = vector.multi_reduction <add>, %73, %cst_26 [1, 2] : vector<1x128x1xf32> to vector<1xf32>
    %75 = vector.shape_cast %74 : vector<1xf32> to vector<1x1x1xf32>
    %76 = vector.extract %75[0, 0, 0] : f32 from vector<1x1x1xf32>
    %cst_27 = arith.constant 1.000000e+00 : f32
    %77 = arith.maximumf %76, %cst_27 : f32
    %78 = arith.divf %71, %77 : f32
    %cst_28 = arith.constant 2.000000e+00 : f32
    %79 = arith.divf %78, %cst_28 : f32
    %cst_29 = arith.constant 0.000000e+00 : f32
    %cst_30 = arith.constant 5.000000e-01 : f32
    %80 = arith.maximumf %cst_29, %79 : f32
    %81 = arith.minimumf %cst_30, %80 : f32
    %82 = vector.broadcast %81 : f32 to vector<1x1xf32>
    %c0_31 = arith.constant 0 : index
    %c0_32 = arith.constant 0 : index
    %83 = vector.load %arg5[%c0_31, %c0_32] : memref<1x1xf32, #tpu.memory_space<vmem>>, vector<1x1xf32>
    tpu.vector_store %arg5[%c0_31, %c0_32], %82 {strides = array<i32>} : memref<1x1xf32, #tpu.memory_space<vmem>>, vector<1x1xf32>,
    %cst_33 = arith.constant 0.000000e+00 : f32
    %84 = vector.broadcast %cst_33 : f32 to vector<128x1xf32>
    %85 = arith.cmpf ogt, %39, %84 : vector<128x1xf32>
    %cst_34 = arith.constant 0.000000e+00 : f32
    %86 = vector.broadcast %cst_34 : f32 to vector<1x128xf32>
    %87 = arith.cmpf ogt, %41, %86 : vector<1x128xf32>
    %88 = vector.broadcast %85 : vector<128x1xi1> to vector<128x128xi1>
    %89 = vector.broadcast %87 : vector<1x128xi1> to vector<128x128xi1>
    %90 = arith.ori %88, %89 : vector<128x128xi1>
    %91 = arith.andi %34, %90 : vector<128x128xi1>
    %92 = arith.cmpi sgt, %20, %19 : vector<128x128xi32>
    %93 = arith.andi %91, %92 : vector<128x128xi1>
    %cst_35 = arith.constant 1.000000e+00 : f32
    %cst_36 = arith.constant 0.000000e+00 : f32
    %94 = vector.broadcast %cst_35 : f32 to vector<128x128xf32>
    %95 = vector.broadcast %cst_36 : f32 to vector<128x128xf32>
    %96 = arith.select %93, %94, %95 : vector<128x128xi1>, vector<128x128xf32>
    %97 = vector.shape_cast %96 : vector<128x128xf32> to vector<1x128x128xf32>
    %cst_37 = arith.constant dense<0.000000e+00> : vector<1xf32>
    %98 = vector.multi_reduction <add>, %97, %cst_37 [1, 2] : vector<1x128x128xf32> to vector<1xf32>
    %99 = vector.shape_cast %98 : vector<1xf32> to vector<1x1x1xf32>
    %100 = vector.extract %99[0, 0, 0] : f32 from vector<1x1x1xf32>
    %cst_38 = arith.constant 0.000000e+00 : f32
    %101 = vector.broadcast %cst_38 : f32 to vector<128x128xf32>
    %102 = arith.select %93, %11, %101 : vector<128x128xi1>, vector<128x128xf32>
    %103 = vector.shape_cast %102 : vector<128x128xf32> to vector<1x128x128xf32>
    %cst_39 = arith.constant dense<0.000000e+00> : vector<1xf32>
    %104 = vector.multi_reduction <add>, %103, %cst_39 [1, 2] : vector<1x128x128xf32> to vector<1xf32>
    %105 = vector.shape_cast %104 : vector<1xf32> to vector<1x1x1xf32>
    %106 = vector.extract %105[0, 0, 0] : f32 from vector<1x1x1xf32>
    %cst_40 = arith.constant 1.000000e+00 : f32
    %107 = arith.maximumf %100, %cst_40 : f32
    %108 = arith.divf %106, %107 : f32
    %cst_41 = arith.constant 0.000000e+00 : f32
    %109 = arith.subf %cst_41, %108 : f32
    %cst_42 = arith.constant 1.000000e+00 : f32
    %110 = arith.subf %109, %cst_42 : f32
    %cst_43 = arith.constant 2.000000e+00 : f32
    %111 = arith.divf %110, %cst_43 : f32
    %cst_44 = arith.constant 1.000000e+00 : f32
    %112 = arith.addf %cst_44, %111 : f32
    %113 = vector.broadcast %112 : f32 to vector<1x1xf32>
    %c0_45 = arith.constant 0 : index
    %c0_46 = arith.constant 0 : index
    %114 = vector.load %arg6[%c0_45, %c0_46] : memref<1x1xf32, #tpu.memory_space<vmem>>, vector<1x1xf32>
    tpu.vector_store %arg6[%c0_45, %c0_46], %113 {strides = array<i32>} : memref<1x1xf32, #tpu.memory_space<vmem>>, vector<1x1xf32>,
    %cst_47 = arith.constant 0.000000e+00 : f32
    %115 = vector.broadcast %cst_47 : f32 to vector<128x128xf32>
    %116 = arith.subf %115, %11 : vector<128x128xf32>
    %117 = vector.broadcast %112 : f32 to vector<128x128xf32>
    %118 = arith.cmpf oge, %116, %117 : vector<128x128xf32>
    %119 = arith.andi %93, %118 : vector<128x128xi1>
    %120 = arith.extui %119 : vector<128x128xi1> to vector<128x128xi8>
    %c0_48 = arith.constant 0 : index
    %c0_49 = arith.constant 0 : index
    %121 = vector.load %arg4[%c0_48, %c0_49] : memref<128x128xi8, #tpu.memory_space<vmem>>, vector<128x128xi8>
    tpu.vector_store %arg4[%c0_48, %c0_49], %120 {strides = array<i32>} : memref<128x128xi8, #tpu.memory_space<vmem>>, vector<128x128xi8>,
    return
  }
}

</mosaic_0001>

<llo_original>
// kernel: tpu_custom_call.1
$region0: #{tpu_custom_call.1}
  #allocation0 [shape = 'u32[]', space=smem, size = 0x4, offset = 0x4, fixed_abs, tag = 'smem constant byte address 0x4 - core index']
  #allocation1 [shape = 'u32[144,128]{1,0:T(1,128)}', space=vmem, size = 0x12000, scoped, tag = 'internal scratch']
  %s0 = inlined_call_operand.vmem [shape: f32[128,32], index: 0, kind: input, shape index: {}]
  %s1 = inlined_call_operand.vmem [shape: s32[128,1], index: 1, kind: input, shape index: {}]
  %s2 = inlined_call_operand.vmem [shape: s32[1,128], index: 2, kind: input, shape index: {}]
  %s3 = inlined_call_operand.hbm [shape: f32[128,128], index: 3, kind: output, shape index: {0}]
  %s4 = inlined_call_operand.hbm [shape: s8[128,128], index: 4, kind: output, shape index: {1}]
  %s5 = inlined_call_operand.hbm [shape: f32[1,1], index: 5, kind: output, shape index: {2}]
  %s6 = inlined_call_operand.hbm [shape: f32[1,1], index: 6, kind: output, shape index: {3}]
  %7 = xla_tuple %s3, %s4, %s5, %s6
  %s8 = sld [smem:[#allocation0]]
  $region46: #{tpu_custom_call.1} parent=0
    _
  %s10 = ssub.s32 1, %s8
  %s11 = scalar_select 0, %s10, %s8
  $region1: #{tpu_custom_call.1} parent=0
    #allocation2 [shape = 'u8[65536]{0}', space=vmem, size = 0x10000, scoped, tag = 'output window, operand 0, single buffered']
    #allocation3 [shape = 's32[1]{0}', space=sflag, size = 0x4, scoped, tag = 'scoped memory for tpu_custom_call.1']
    #allocation4 [shape = 'u8[16384]{0}', space=vmem, size = 0x4000, scoped, tag = 'output window, operand 1, single buffered']
    #allocation5 [shape = 's32[1]{0}', space=sflag, size = 0x4, scoped, tag = 'scoped memory for tpu_custom_call.1']
    #allocation6 [shape = 'u8[512]{0}', space=vmem, size = 0x400, scoped, tag = 'output window, operand 2, single buffered']
    #allocation7 [shape = 'u8[512]{0}', space=vmem, size = 0x400, scoped, tag = 'output window, operand 3, single buffered']
    #allocation8 [shape = 's32[1]{0}', space=sflag, size = 0x4, scoped, tag = 'scoped memory for tpu_custom_call.1']
    %12 = vsyncpa [#allocation3], 0
    %13 = vsyncpa [#allocation5], 0
    %14 = vsyncpa [#allocation8], 0
    // Predicated region
    $region2: #{tpu_custom_call.1} parent=1 // pred_check
      _
    $region3: #{tpu_custom_call.1} parent=1 // pred_check_branch
      %16 = sbr.rel (0) target = $region5
    $region4: #{tpu_custom_call.1} parent=1 // pred_region
      _
    $region5: #{tpu_custom_call.1} parent=1 // pred_fallthru
      _
    // Predicated region
    $region6: #{tpu_custom_call.1} parent=1 // pred_check
      _
    $region7: #{tpu_custom_call.1} parent=1 // pred_check_branch
      %18 = sbr.rel (0) target = $region9
    $region8: #{tpu_custom_call.1} parent=1 // pred_region
      _
    $region9: #{tpu_custom_call.1} parent=1 // pred_fallthru
      _
    // Predicated region
    $region10: #{tpu_custom_call.1} parent=1 // pred_check
      _
    $region11: #{tpu_custom_call.1} parent=1 // pred_check_branch
      %20 = sbr.rel (0) target = $region13
    $region12: #{tpu_custom_call.1} parent=1 // pred_region
      _
    $region13: #{tpu_custom_call.1} parent=1 // pred_fallthru
      _
    %v23 = vld [vmem:[%s0] sm:$0xff]
    %v24 = vld [vmem:[%s0 + $0x8] sm:$0xff]
    %v25 = vld [vmem:[%s0 + $0x10] sm:$0xff]
    %v26 = vld [vmem:[%s0 + $0x18] sm:$0xff]
    %v27 = vld [vmem:[%s0 + $0x20] sm:$0xff]
    %v28 = vld [vmem:[%s0 + $0x28] sm:$0xff]
    %v29 = vld [vmem:[%s0 + $0x30] sm:$0xff]
    %v30 = vld [vmem:[%s0 + $0x38] sm:$0xff]
    %v31 = vld [vmem:[%s0 + $0x40] sm:$0xff]
    %v32 = vld [vmem:[%s0 + $0x48] sm:$0xff]
    %v33 = vld [vmem:[%s0 + $0x50] sm:$0xff]
    %v34 = vld [vmem:[%s0 + $0x58] sm:$0xff]
    %v35 = vld [vmem:[%s0 + $0x60] sm:$0xff]
    %v36 = vld [vmem:[%s0 + $0x68] sm:$0xff]
    %v37 = vld [vmem:[%s0 + $0x70] sm:$0xff]
    %v38 = vld [vmem:[%s0 + $0x78] sm:$0xff]
    %v39 = vmul.f32 %v23, %v23
    %v40 = vmul.f32 %v24, %v24
    %v41 = vmul.f32 %v25, %v25
    %v42 = vmul.f32 %v26, %v26
    %v43 = vmul.f32 %v27, %v27
    %v44 = vmul.f32 %v28, %v28
    %v45 = vmul.f32 %v29, %v29
    %v46 = vmul.f32 %v30, %v30
    %v47 = vmul.f32 %v31, %v31
    %v48 = vmul.f32 %v32, %v32
    %v49 = vmul.f32 %v33, %v33
    %v50 = vmul.f32 %v34, %v34
    %v51 = vmul.f32 %v35, %v35
    %v52 = vmul.f32 %v36, %v36
    %v53 = vmul.f32 %v37, %v37
    %v54 = vmul.f32 %v38, %v38
    %vm55 = vcmask 261120
    %v56 = vsel %vm55, %v39, 0.0
    %57 = vadd.xlane.f32.xlu0 %v56
    %v58 = vpop.xlane.xlu0 %57
    %v59 = vsel %vm55, %v40, 0.0
    %60 = vadd.xlane.f32.xlu0 %v59
    %v61 = vpop.xlane.xlu0 %60
    %v62 = vsel %vm55, %v41, 0.0
    %63 = vadd.xlane.f32.xlu0 %v62
    %v64 = vpop.xlane.xlu0 %63
    %v65 = vsel %vm55, %v42, 0.0
    %66 = vadd.xlane.f32.xlu0 %v65
    %v67 = vpop.xlane.xlu0 %66
    %v68 = vsel %vm55, %v43, 0.0
    %69 = vadd.xlane.f32.xlu0 %v68
    %v70 = vpop.xlane.xlu0 %69
    %v71 = vsel %vm55, %v44, 0.0
    %72 = vadd.xlane.f32.xlu0 %v71
    %v73 = vpop.xlane.xlu0 %72
    %v74 = vsel %vm55, %v45, 0.0
    %75 = vadd.xlane.f32.xlu0 %v74
    %v76 = vpop.xlane.xlu0 %75
    %v77 = vsel %vm55, %v46, 0.0
    %78 = vadd.xlane.f32.xlu0 %v77
    %v79 = vpop.xlane.xlu0 %78
    %v80 = vsel %vm55, %v47, 0.0
    %81 = vadd.xlane.f32.xlu0 %v80
    %v82 = vpop.xlane.xlu0 %81
    %v83 = vsel %vm55, %v48, 0.0
    %84 = vadd.xlane.f32.xlu0 %v83
    %v85 = vpop.xlane.xlu0 %84
    %v86 = vsel %vm55, %v49, 0.0
    %87 = vadd.xlane.f32.xlu0 %v86
    %v88 = vpop.xlane.xlu0 %87
    %v89 = vsel %vm55, %v50, 0.0
    %90 = vadd.xlane.f32.xlu0 %v89
    %v91 = vpop.xlane.xlu0 %90
    %v92 = vsel %vm55, %v51, 0.0
    %93 = vadd.xlane.f32.xlu0 %v92
    %v94 = vpop.xlane.xlu0 %93
    %v95 = vsel %vm55, %v52, 0.0
    %96 = vadd.xlane.f32.xlu0 %v95
    %v97 = vpop.xlane.xlu0 %96
    %v98 = vsel %vm55, %v53, 0.0
    %99 = vadd.xlane.f32.xlu0 %v98
    %v100 = vpop.xlane.xlu0 %99
    %v101 = vsel %vm55, %v54, 0.0
    %102 = vadd.xlane.f32.xlu0 %v101
    %v103 = vpop.xlane.xlu0 %102
    %v104 = vmax.f32 %v58, 1e-24
    %v105 = vmax.f32 %v61, 1e-24
    %v106 = vmax.f32 %v64, 1e-24
    %v107 = vmax.f32 %v67, 1e-24
    %v108 = vmax.f32 %v70, 1e-24
    %v109 = vmax.f32 %v73, 1e-24
    %v110 = vmax.f32 %v76, 1e-24
    %v111 = vmax.f32 %v79, 1e-24
    %v112 = vmax.f32 %v82, 1e-24
    %v113 = vmax.f32 %v85, 1e-24
    %v114 = vmax.f32 %v88, 1e-24
    %v115 = vmax.f32 %v91, 1e-24
    %v116 = vmax.f32 %v94, 1e-24
    %v117 = vmax.f32 %v97, 1e-24
    %v118 = vmax.f32 %v100, 1e-24
    %v119 = vmax.f32 %v103, 1e-24
    %v120 = vrsqrt.pop %v104
    %v121 = vrsqrt.pop %v105
    %v122 = vrsqrt.pop %v106
    %v123 = vrsqrt.pop %v107
    %v124 = vrsqrt.pop %v108
    %v125 = vrsqrt.pop %v109
    %v126 = vrsqrt.pop %v110
    %v127 = vrsqrt.pop %v111
    %v128 = vrsqrt.pop %v112
    %v129 = vrsqrt.pop %v113
    %v130 = vrsqrt.pop %v114
    %v131 = vrsqrt.pop %v115
    %v132 = vrsqrt.pop %v116
    %v133 = vrsqrt.pop %v117
    %v134 = vrsqrt.pop %v118
    %v135 = vrsqrt.pop %v119
    %v136 = vmul.f32 %v23, %v120
    %v137 = vmul.f32 %v24, %v121
    %v138 = vmul.f32 %v25, %v122
    %v139 = vmul.f32 %v26, %v123
    %v140 = vmul.f32 %v27, %v124
    %v141 = vmul.f32 %v28, %v125
    %v142 = vmul.f32 %v29, %v126
    %v143 = vmul.f32 %v30, %v127
    %v144 = vmul.f32 %v31, %v128
    %v145 = vmul.f32 %v32, %v129
    %v146 = vmul.f32 %v33, %v130
    %v147 = vmul.f32 %v34, %v131
    %v148 = vmul.f32 %v35, %v132
    %v149 = vmul.f32 %v36, %v133
    %v150 = vmul.f32 %v37, %v134
    %v151 = vmul.f32 %v38, %v135
    %v153 = vsel %vm55, %v136, 0
    %v156 = vsel %vm55, %v137, 0
    %v159 = vsel %vm55, %v138, 0
    %v162 = vsel %vm55, %v139, 0
    %v165 = vsel %vm55, %v140, 0
    %v168 = vsel %vm55, %v141, 0
    %v171 = vsel %vm55, %v142, 0
    %v174 = vsel %vm55, %v143, 0
    %v177 = vsel %vm55, %v144, 0
    %v180 = vsel %vm55, %v145, 0
    %v183 = vsel %vm55, %v146, 0
    %v186 = vsel %vm55, %v147, 0
    %v189 = vsel %vm55, %v148, 0
    %v192 = vsel %vm55, %v149, 0
    %v195 = vsel %vm55, %v150, 0
    %v198 = vsel %vm55, %v151, 0
    %200 = vmatprep.subr.mxu0 0.0
    %201 = vmatpush1.xpose.msra.mxu0 %v153
    %202 = vmatprep.subr.mxu0 0.0
    %203 = vmatpush1.xpose.msra.mxu0 %v156
    %204 = vmatprep.subr.mxu0 0.0
    %205 = vmatpush1.xpose.msra.mxu0 %v159
    %206 = vmatprep.subr.mxu0 0.0
    %207 = vmatpush1.xpose.msra.mxu0 %v162
    %208 = vmatprep.subr.mxu0 0.0
    %209 = vmatpush1.xpose.msra.mxu0 %v165
    %210 = vmatprep.subr.mxu0 0.0
    %211 = vmatpush1.xpose.msra.mxu0 %v168
    %212 = vmatprep.subr.mxu0 0.0
    %213 = vmatpush1.xpose.msra.mxu0 %v171
    %214 = vmatprep.subr.mxu0 0.0
    %215 = vmatpush1.xpose.msra.mxu0 %v174
    %216 = vmatprep.subr.mxu0 0.0
    %217 = vmatpush1.xpose.msra.mxu0 %v177
    %218 = vmatprep.subr.mxu0 0.0
    %219 = vmatpush1.xpose.msra.mxu0 %v180
    %220 = vmatprep.subr.mxu0 0.0
    %221 = vmatpush1.xpose.msra.mxu0 %v183
    %222 = vmatprep.subr.mxu0 0.0
    %223 = vmatpush1.xpose.msra.mxu0 %v186
    %224 = vmatprep.subr.mxu0 0.0
    %225 = vmatpush1.xpose.msra.mxu0 %v189
    %226 = vmatprep.subr.mxu0 0.0
    %227 = vmatpush1.xpose.msra.mxu0 %v192
    %228 = vmatprep.subr.mxu0 0.0
    %229 = vmatpush1.xpose.msra.mxu0 %v195
    %230 = vmatprep.subr.mxu0 0.0
    %231 = vmatpush1.xpose.msra.mxu0 %v198
    %232 = vmatprep.subr.mxu0 0.0
    %233 = vmatpush1.xpose.msra.mxu0 0.0
    %234 = vmatprep.subr.mxu0 0.0
    %235 = vmatpush1.xpose.msra.mxu0 0.0
    %236 = vmatprep.subr.mxu0 0.0
    %237 = vmatpush1.xpose.msra.mxu0 0.0
    %238 = vmatprep.subr.mxu0 0.0
    %239 = vmatpush1.xpose.msra.mxu0 0.0
    %240 = vmatprep.subr.mxu0 0.0
    %241 = vmatpush1.xpose.msra.mxu0 0.0
    %242 = vmatprep.subr.mxu0 0.0
    %243 = vmatpush1.xpose.msra.mxu0 0.0
    %244 = vmatprep.subr.mxu0 0.0
    %245 = vmatpush1.xpose.msra.mxu0 0.0
    %246 = vmatprep.subr.mxu0 0.0
    %247 = vmatpush1.xpose.msra.mxu0 0.0
    %248 = vmatprep.subr.mxu0 0.0
    %249 = vmatpush1.xpose.msra.mxu0 0.0
    %250 = vmatprep.subr.mxu0 0.0
    %251 = vmatpush1.xpose.msra.mxu0 0.0
    %252 = vmatprep.subr.mxu0 0.0
    %253 = vmatpush1.xpose.msra.mxu0 0.0
    %254 = vmatprep.subr.mxu0 0.0
    %255 = vmatpush1.xpose.msra.mxu0 0.0
    %256 = vmatprep.subr.mxu0 0.0
    %257 = vmatpush1.xpose.msra.mxu0 0.0
    %258 = vmatprep.subr.mxu0 0.0
    %259 = vmatpush1.xpose.msra.mxu0 0.0
    %260 = vmatprep.subr.mxu0 0.0
    %261 = vmatpush1.xpose.msra.mxu0 0.0
    %262 = vmatprep.subr.mxu0 0.0
    %263 = vmatpush1.xpose.msra.mxu0 0.0
    %264 = vmatprep.mubr.f32.mxu0 0.0
    %265 = vmatmul.mubr.f32.gmra.mrb[0].mxu0 %v153
    %v266 = vpop.f32.mrb[0].mxu0
    %v267 = vadd.f32 0.0, %v266
    %v268 = vpop.f32.mrb[0].mxu0
    %269 = vmatprep.mubr.f32.mxu0 0.0
    %270 = vmatmul.mubr.f32.gmra.mrb[0].mxu0 %v156
    %v271 = vpop.f32.mrb[0].mxu0
    %v272 = vadd.f32 0.0, %v271
    %v273 = vpop.f32.mrb[0].mxu0
    %274 = vmatprep.mubr.f32.mxu0 0.0
    %275 = vmatmul.mubr.f32.gmra.mrb[0].mxu0 %v159
    %v276 = vpop.f32.mrb[0].mxu0
    %v277 = vadd.f32 0.0, %v276
    %v278 = vpop.f32.mrb[0].mxu0
    %279 = vmatprep.mubr.f32.mxu0 0.0
    %280 = vmatmul.mubr.f32.gmra.mrb[0].mxu0 %v162
    %v281 = vpop.f32.mrb[0].mxu0
    %v282 = vadd.f32 0.0, %v281
    %v283 = vpop.f32.mrb[0].mxu0
    %284 = vmatprep.mubr.f32.mxu0 0.0
    %285 = vmatmul.mubr.f32.gmra.mrb[0].mxu0 %v165
    %v286 = vpop.f32.mrb[0].mxu0
    %v287 = vadd.f32 0.0, %v286
    %v288 = vpop.f32.mrb[0].mxu0
    %289 = vmatprep.mubr.f32.mxu0 0.0
    %290 = vmatmul.mubr.f32.gmra.mrb[0].mxu0 %v168
    %v291 = vpop.f32.mrb[0].mxu0
    %v292 = vadd.f32 0.0, %v291
    %v293 = vpop.f32.mrb[0].mxu0
    %294 = vmatprep.mubr.f32.mxu0 0.0
    %295 = vmatmul.mubr.f32.gmra.mrb[0].mxu0 %v171
    %v296 = vpop.f32.mrb[0].mxu0
    %v297 = vadd.f32 0.0, %v296
    %v298 = vpop.f32.mrb[0].mxu0
    %299 = vmatprep.mubr.f32.mxu0 0.0
    %300 = vmatmul.mubr.f32.gmra.mrb[0].mxu0 %v174
    %v301 = vpop.f32.mrb[0].mxu0
    %v302 = vadd.f32 0.0, %v301
    %v303 = vpop.f32.mrb[0].mxu0
    %304 = vmatprep.mubr.f32.mxu0 0.0
    %305 = vmatmul.mubr.f32.gmra.mrb[0].mxu0 %v177
    %v306 = vpop.f32.mrb[0].mxu0
    %v307 = vadd.f32 0.0, %v306
    %v308 = vpop.f32.mrb[0].mxu0
    %309 = vmatprep.mubr.f32.mxu0 0.0
    %310 = vmatmul.mubr.f32.gmra.mrb[0].mxu0 %v180
    %v311 = vpop.f32.mrb[0].mxu0
    %v312 = vadd.f32 0.0, %v311
    %v313 = vpop.f32.mrb[0].mxu0
    %314 = vmatprep.mubr.f32.mxu0 0.0
    %315 = vmatmul.mubr.f32.gmra.mrb[0].mxu0 %v183
    %v316 = vpop.f32.mrb[0].mxu0
    %v317 = vadd.f32 0.0, %v316
    %v318 = vpop.f32.mrb[0].mxu0
    %319 = vmatprep.mubr.f32.mxu0 0.0
    %320 = vmatmul.mubr.f32.gmra.mrb[0].mxu0 %v186
    %v321 = vpop.f32.mrb[0].mxu0
    %v322 = vadd.f32 0.0, %v321
    %v323 = vpop.f32.mrb[0].mxu0
    %324 = vmatprep.mubr.f32.mxu0 0.0
    %325 = vmatmul.mubr.f32.gmra.mrb[0].mxu0 %v189
    %v326 = vpop.f32.mrb[0].mxu0
    %v327 = vadd.f32 0.0, %v326
    %v328 = vpop.f32.mrb[0].mxu0
    %329 = vmatprep.mubr.f32.mxu0 0.0
    %330 = vmatmul.mubr.f32.gmra.mrb[0].mxu0 %v192
    %v331 = vpop.f32.mrb[0].mxu0
    %v332 = vadd.f32 0.0, %v331
    %v333 = vpop.f32.mrb[0].mxu0
    %334 = vmatprep.mubr.f32.mxu0 0.0
    %335 = vmatmul.mubr.f32.gmra.mrb[0].mxu0 %v195
    %v336 = vpop.f32.mrb[0].mxu0
    %v337 = vadd.f32 0.0, %v336
    %v338 = vpop.f32.mrb[0].mxu0
    %339 = vmatprep.mubr.f32.mxu0 0.0
    %340 = vmatmul.mubr.f32.gmra.mrb[0].mxu0 %v198
    %v341 = vpop.f32.mrb[0].mxu0
    %v342 = vadd.f32 0.0, %v341
    %v343 = vpop.f32.mrb[0].mxu0
    %344 = vdwg.mxu0
    %v345 = vsub.f32 0.0, %v267
    %v346 = vsub.f32 0.0, %v272
    %v347 = vsub.f32 0.0, %v277
    %v348 = vsub.f32 0.0, %v282
    %v349 = vsub.f32 0.0, %v287
    %v350 = vsub.f32 0.0, %v292
    %v351 = vsub.f32 0.0, %v297
    %v352 = vsub.f32 0.0, %v302
    %v353 = vsub.f32 0.0, %v307
    %v354 = vsub.f32 0.0, %v312
    %v355 = vsub.f32 0.0, %v317
    %v356 = vsub.f32 0.0, %v322
    %v357 = vsub.f32 0.0, %v327
    %v358 = vsub.f32 0.0, %v332
    %v359 = vsub.f32 0.0, %v337
    %v360 = vsub.f32 0.0, %v342
    %361 = vst [vmem:[#allocation2] sm:$0xff] %v345
    %362 = vst [vmem:[#allocation2 + $0x8] sm:$0xff] %v346
    %363 = vst [vmem:[#allocation2 + $0x10] sm:$0xff] %v347
    %364 = vst [vmem:[#allocation2 + $0x18] sm:$0xff] %v348
    %365 = vst [vmem:[#allocation2 + $0x20] sm:$0xff] %v349
    %366 = vst [vmem:[#allocation2 + $0x28] sm:$0xff] %v350
    %367 = vst [vmem:[#allocation2 + $0x30] sm:$0xff] %v351
    %368 = vst [vmem:[#allocation2 + $0x38] sm:$0xff] %v352
    %369 = vst [vmem:[#allocation2 + $0x40] sm:$0xff] %v353
    %370 = vst [vmem:[#allocation2 + $0x48] sm:$0xff] %v354
    %371 = vst [vmem:[#allocation2 + $0x50] sm:$0xff] %v355
    %372 = vst [vmem:[#allocation2 + $0x58] sm:$0xff] %v356
    %373 = vst [vmem:[#allocation2 + $0x60] sm:$0xff] %v357
    %374 = vst [vmem:[#allocation2 + $0x68] sm:$0xff] %v358
    %375 = vst [vmem:[#allocation2 + $0x70] sm:$0xff] %v359
    %376 = vst [vmem:[#allocation2 + $0x78] sm:$0xff] %v360
    %v377 = vld [vmem:[%s1] sm:$0xff]
    %v378 = vld [vmem:[%s1 + $0x8] sm:$0xff]
    %v379 = vld [vmem:[%s1 + $0x10] sm:$0xff]
    %v380 = vld [vmem:[%s1 + $0x18] sm:$0xff]
    %v381 = vld [vmem:[%s1 + $0x20] sm:$0xff]
    %v382 = vld [vmem:[%s1 + $0x28] sm:$0xff]
    %v383 = vld [vmem:[%s1 + $0x30] sm:$0xff]
    %v384 = vld [vmem:[%s1 + $0x38] sm:$0xff]
    %v385 = vld [vmem:[%s1 + $0x40] sm:$0xff]
    %v386 = vld [vmem:[%s1 + $0x48] sm:$0xff]
    %v387 = vld [vmem:[%s1 + $0x50] sm:$0xff]
    %v388 = vld [vmem:[%s1 + $0x58] sm:$0xff]
    %v389 = vld [vmem:[%s1 + $0x60] sm:$0xff]
    %v390 = vld [vmem:[%s1 + $0x68] sm:$0xff]
    %v391 = vld [vmem:[%s1 + $0x70] sm:$0xff]
    %v392 = vld [vmem:[%s1 + $0x78] sm:$0xff]
    %v393 = vld [vmem:[%s2] sm:$0x1]
    %vm394 = vcmp.ge.s32.totalorder %v377, 0
    %vm395 = vcmp.ge.s32.totalorder %v378, 0
    %vm396 = vcmp.ge.s32.totalorder %v379, 0
    %vm397 = vcmp.ge.s32.totalorder %v380, 0
    %vm398 = vcmp.ge.s32.totalorder %v381, 0
    %vm399 = vcmp.ge.s32.totalorder %v382, 0
    %vm400 = vcmp.ge.s32.totalorder %v383, 0
    %vm401 = vcmp.ge.s32.totalorder %v384, 0
    %vm402 = vcmp.ge.s32.totalorder %v385, 0
    %vm403 = vcmp.ge.s32.totalorder %v386, 0
    %vm404 = vcmp.ge.s32.totalorder %v387, 0
    %vm405 = vcmp.ge.s32.totalorder %v388, 0
    %vm406 = vcmp.ge.s32.totalorder %v389, 0
    %vm407 = vcmp.ge.s32.totalorder %v390, 0
    %vm408 = vcmp.ge.s32.totalorder %v391, 0
    %vm409 = vcmp.ge.s32.totalorder %v392, 0
    %vm410 = vcmp.ge.s32.totalorder %v393, 0
    %v411 = vlaneseq
    %v412 = vshrl.u32 %v411, 7
    %v413 = vadd.s32 %v412, 8
    %v414 = vadd.s32 %v412, 16
    %v415 = vadd.s32 %v412, 24
    %v416 = vadd.s32 %v412, 32
    %v417 = vadd.s32 %v412, 40
    %v418 = vadd.s32 %v412, 48
    %v419 = vadd.s32 %v412, 56
    %v420 = vadd.s32 %v412, 64
    %v421 = vadd.s32 %v412, 72
    %v422 = vadd.s32 %v412, 80
    %v423 = vadd.s32 %v412, 88
    %v424 = vadd.s32 %v412, 96
    %v425 = vadd.s32 %v412, 104
    %v426 = vadd.s32 %v412, 112
    %v427 = vadd.s32 %v412, 120
    %v428 = vlaneseq
    %v429 = vand.u32 %v428, 127
    %430 = vset.pattern.permute.xlu0 0
    %431 = vperm.xlu0 %430, %v377
    %v432 = vpop.permute.xlu0 %431
    %433 = vset.pattern.permute.xlu0 0
    %434 = vperm.xlu0 %433, %v378
    %v435 = vpop.permute.xlu0 %434
    %436 = vset.pattern.permute.xlu0 0
    %437 = vperm.xlu0 %436, %v379
    %v438 = vpop.permute.xlu0 %437
    %439 = vset.pattern.permute.xlu0 0
    %440 = vperm.xlu0 %439, %v380
    %v441 = vpop.permute.xlu0 %440
    %442 = vset.pattern.permute.xlu0 0
    %443 = vperm.xlu0 %442, %v381
    %v444 = vpop.permute.xlu0 %443
    %445 = vset.pattern.permute.xlu0 0
    %446 = vperm.xlu0 %445, %v382
    %v447 = vpop.permute.xlu0 %446
    %448 = vset.pattern.permute.xlu0 0
    %449 = vperm.xlu0 %448, %v383
    %v450 = vpop.permute.xlu0 %449
    %451 = vset.pattern.permute.xlu0 0
    %452 = vperm.xlu0 %451, %v384
    %v453 = vpop.permute.xlu0 %452
    %454 = vset.pattern.permute.xlu0 0
    %455 = vperm.xlu0 %454, %v385
    %v456 = vpop.permute.xlu0 %455
    %457 = vset.pattern.permute.xlu0 0
    %458 = vperm.xlu0 %457, %v386
    %v459 = vpop.permute.xlu0 %458
    %460 = vset.pattern.permute.xlu0 0
    %461 = vperm.xlu0 %460, %v387
    %v462 = vpop.permute.xlu0 %461
    %463 = vset.pattern.permute.xlu0 0
    %464 = vperm.xlu0 %463, %v388
    %v465 = vpop.permute.xlu0 %464
    %466 = vset.pattern.permute.xlu0 0
    %467 = vperm.xlu0 %466, %v389
    %v468 = vpop.permute.xlu0 %467
    %469 = vset.pattern.permute.xlu0 0
    %470 = vperm.xlu0 %469, %v390
    %v471 = vpop.permute.xlu0 %470
    %472 = vset.pattern.permute.xlu0 0
    %473 = vperm.xlu0 %472, %v391
    %v474 = vpop.permute.xlu0 %473
    %475 = vset.pattern.permute.xlu0 0
    %476 = vperm.xlu0 %475, %v392
    %v477 = vpop.permute.xlu0 %476
    %v478 = vlaneseq
    %v479 = vshrl.u32 %v478, 7
    %v480 = vsub.s32 0, %v479
    %v481 = vrot.slane %v393, %v480
    %vm482 = vcmp.eq.s32.totalorder %v432, %v481
    %vm483 = vcmp.eq.s32.totalorder %v435, %v481
    %vm484 = vcmp.eq.s32.totalorder %v438, %v481
    %vm485 = vcmp.eq.s32.totalorder %v441, %v481
    %vm486 = vcmp.eq.s32.totalorder %v444, %v481
    %vm487 = vcmp.eq.s32.totalorder %v447, %v481
    %vm488 = vcmp.eq.s32.totalorder %v450, %v481
    %vm489 = vcmp.eq.s32.totalorder %v453, %v481
    %vm490 = vcmp.eq.s32.totalorder %v456, %v481
    %vm491 = vcmp.eq.s32.totalorder %v459, %v481
    %vm492 = vcmp.eq.s32.totalorder %v462, %v481
    %vm493 = vcmp.eq.s32.totalorder %v465, %v481
    %vm494 = vcmp.eq.s32.totalorder %v468, %v481
    %vm495 = vcmp.eq.s32.totalorder %v471, %v481
    %vm496 = vcmp.eq.s32.totalorder %v474, %v481
    %vm497 = vcmp.eq.s32.totalorder %v477, %v481
    %vm498 = vcmp.ne.s32.totalorder %v412, %v429
    %vm499 = vcmp.ne.s32.totalorder %v413, %v429
    %vm500 = vcmp.ne.s32.totalorder %v414, %v429
    %vm501 = vcmp.ne.s32.totalorder %v415, %v429
    %vm502 = vcmp.ne.s32.totalorder %v416, %v429
    %vm503 = vcmp.ne.s32.totalorder %v417, %v429
    %vm504 = vcmp.ne.s32.totalorder %v418, %v429
    %vm505 = vcmp.ne.s32.totalorder %v419, %v429
    %vm506 = vcmp.ne.s32.totalorder %v420, %v429
    %vm507 = vcmp.ne.s32.totalorder %v421, %v429
    %vm508 = vcmp.ne.s32.totalorder %v422, %v429
    %vm509 = vcmp.ne.s32.totalorder %v423, %v429
    %vm510 = vcmp.ne.s32.totalorder %v424, %v429
    %vm511 = vcmp.ne.s32.totalorder %v425, %v429
    %vm512 = vcmp.ne.s32.totalorder %v426, %v429
    %vm513 = vcmp.ne.s32.totalorder %v427, %v429
    %vm514 = vmand %vm482, %vm498
    %vm515 = vmand %vm483, %vm499
    %vm516 = vmand %vm484, %vm500
    %vm517 = vmand %vm485, %vm501
    %vm518 = vmand %vm486, %vm502
    %vm519 = vmand %vm487, %vm503
    %vm520 = vmand %vm488, %vm504
    %vm521 = vmand %vm489, %vm505
    %vm522 = vmand %vm490, %vm506
    %vm523 = vmand %vm491, %vm507
    %vm524 = vmand %vm492, %vm508
    %vm525 = vmand %vm493, %vm509
    %vm526 = vmand %vm494, %vm510
    %vm527 = vmand %vm495, %vm511
    %vm528 = vmand %vm496, %vm512
    %vm529 = vmand %vm497, %vm513
    %v530 = vsel %vm394, 1, 0
    %v531 = vsel %vm395, 1, 0
    %v532 = vsel %vm396, 1, 0
    %v533 = vsel %vm397, 1, 0
    %v534 = vsel %vm398, 1, 0
    %v535 = vsel %vm399, 1, 0
    %v536 = vsel %vm400, 1, 0
    %v537 = vsel %vm401, 1, 0
    %v538 = vsel %vm402, 1, 0
    %v539 = vsel %vm403, 1, 0
    %v540 = vsel %vm404, 1, 0
    %v541 = vsel %vm405, 1, 0
    %v542 = vsel %vm406, 1, 0
    %v543 = vsel %vm407, 1, 0
    %v544 = vsel %vm408, 1, 0
    %v545 = vsel %vm409, 1, 0
    %546 = vset.pattern.permute.xlu0 0
    %547 = vperm.xlu0 %546, %v530
    %v548 = vpop.permute.xlu0 %547
    %549 = vset.pattern.permute.xlu0 0
    %550 = vperm.xlu0 %549, %v531
    %v551 = vpop.permute.xlu0 %550
    %552 = vset.pattern.permute.xlu0 0
    %553 = vperm.xlu0 %552, %v532
    %v554 = vpop.permute.xlu0 %553
    %555 = vset.pattern.permute.xlu0 0
    %556 = vperm.xlu0 %555, %v533
    %v557 = vpop.permute.xlu0 %556
    %558 = vset.pattern.permute.xlu0 0
    %559 = vperm.xlu0 %558, %v534
    %v560 = vpop.permute.xlu0 %559
    %561 = vset.pattern.permute.xlu0 0
    %562 = vperm.xlu0 %561, %v535
    %v563 = vpop.permute.xlu0 %562
    %564 = vset.pattern.permute.xlu0 0
    %565 = vperm.xlu0 %564, %v536
    %v566 = vpop.permute.xlu0 %565
    %567 = vset.pattern.permute.xlu0 0
    %568 = vperm.xlu0 %567, %v537
    %v569 = vpop.permute.xlu0 %568
    %570 = vset.pattern.permute.xlu0 0
    %571 = vperm.xlu0 %570, %v538
    %v572 = vpop.permute.xlu0 %571
    %573 = vset.pattern.permute.xlu0 0
    %574 = vperm.xlu0 %573, %v539
    %v575 = vpop.permute.xlu0 %574
    %576 = vset.pattern.permute.xlu0 0
    %577 = vperm.xlu0 %576, %v540
    %v578 = vpop.permute.xlu0 %577
    %579 = vset.pattern.permute.xlu0 0
    %580 = vperm.xlu0 %579, %v541
    %v581 = vpop.permute.xlu0 %580
    %582 = vset.pattern.permute.xlu0 0
    %583 = vperm.xlu0 %582, %v542
    %v584 = vpop.permute.xlu0 %583
    %585 = vset.pattern.permute.xlu0 0
    %586 = vperm.xlu0 %585, %v543
    %v587 = vpop.permute.xlu0 %586
    %588 = vset.pattern.permute.xlu0 0
    %589 = vperm.xlu0 %588, %v544
    %v590 = vpop.permute.xlu0 %589
    %591 = vset.pattern.permute.xlu0 0
    %592 = vperm.xlu0 %591, %v545
    %v593 = vpop.permute.xlu0 %592
    %vm594 = vcmp.eq.s32.totalorder %v548, 1
    %vm595 = vcmp.eq.s32.totalorder %v551, 1
    %vm596 = vcmp.eq.s32.totalorder %v554, 1
    %vm597 = vcmp.eq.s32.totalorder %v557, 1
    %vm598 = vcmp.eq.s32.totalorder %v560, 1
    %vm599 = vcmp.eq.s32.totalorder %v563, 1
    %vm600 = vcmp.eq.s32.totalorder %v566, 1
    %vm601 = vcmp.eq.s32.totalorder %v569, 1
    %vm602 = vcmp.eq.s32.totalorder %v572, 1
    %vm603 = vcmp.eq.s32.totalorder %v575, 1
    %vm604 = vcmp.eq.s32.totalorder %v578, 1
    %vm605 = vcmp.eq.s32.totalorder %v581, 1
    %vm606 = vcmp.eq.s32.totalorder %v584, 1
    %vm607 = vcmp.eq.s32.totalorder %v587, 1
    %vm608 = vcmp.eq.s32.totalorder %v590, 1
    %vm609 = vcmp.eq.s32.totalorder %v593, 1
    %v610 = vsel %vm410, 1, 0
    %v611 = vlaneseq
    %v612 = vshrl.u32 %v611, 7
    %v613 = vsub.s32 0, %v612
    %v614 = vrot.slane %v610, %v613
    %vm615 = vcmp.eq.s32.totalorder %v614, 1
    %vm616 = vmand %vm594, %vm615
    %vm617 = vmand %vm595, %vm615
    %vm618 = vmand %vm596, %vm615
    %vm619 = vmand %vm597, %vm615
    %vm620 = vmand %vm598, %vm615
    %vm621 = vmand %vm599, %vm615
    %vm622 = vmand %vm600, %vm615
    %vm623 = vmand %vm601, %vm615
    %vm624 = vmand %vm602, %vm615
    %vm625 = vmand %vm603, %vm615
    %vm626 = vmand %vm604, %vm615
    %vm627 = vmand %vm605, %vm615
    %vm628 = vmand %vm606, %vm615
    %vm629 = vmand %vm607, %vm615
    %vm630 = vmand %vm608, %vm615
    %vm631 = vmand %vm609, %vm615
    %vm632 = vmand %vm514, %vm616
    %vm633 = vmand %vm515, %vm617
    %vm634 = vmand %vm516, %vm618
    %vm635 = vmand %vm517, %vm619
    %vm636 = vmand %vm518, %vm620
    %vm637 = vmand %vm519, %vm621
    %vm638 = vmand %vm520, %vm622
    %vm639 = vmand %vm521, %vm623
    %vm640 = vmand %vm522, %vm624
    %vm641 = vmand %vm523, %vm625
    %vm642 = vmand %vm524, %vm626
    %vm643 = vmand %vm525, %vm627
    %vm644 = vmand %vm526, %vm628
    %vm645 = vmand %vm527, %vm629
    %vm646 = vmand %vm528, %vm630
    %vm647 = vmand %vm529, %vm631
    %vm648 = vmxor %vm482, 1
    %vm649 = vmxor %vm483, 1
    %vm650 = vmxor %vm484, 1
    %vm651 = vmxor %vm485, 1
    %vm652 = vmxor %vm486, 1
    %vm653 = vmxor %vm487, 1
    %vm654 = vmxor %vm488, 1
    %vm655 = vmxor %vm489, 1
    %vm656 = vmxor %vm490, 1
    %vm657 = vmxor %vm491, 1
    %vm658 = vmxor %vm492, 1
    %vm659 = vmxor %vm493, 1
    %vm660 = vmxor %vm494, 1
    %vm661 = vmxor %vm495, 1
    %vm662 = vmxor %vm496, 1
    %vm663 = vmxor %vm497, 1
    %vm664 = vmand %vm648, %vm616
    %vm665 = vmand %vm649, %vm617
    %vm666 = vmand %vm650, %vm618
    %vm667 = vmand %vm651, %vm619
    %vm668 = vmand %vm652, %vm620
    %vm669 = vmand %vm653, %vm621
    %vm670 = vmand %vm654, %vm622
    %vm671 = vmand %vm655, %vm623
    %vm672 = vmand %vm656, %vm624
    %vm673 = vmand %vm657, %vm625
    %vm674 = vmand %vm658, %vm626
    %vm675 = vmand %vm659, %vm627
    %vm676 = vmand %vm660, %vm628
    %vm677 = vmand %vm661, %vm629
    %vm678 = vmand %vm662, %vm630
    %vm679 = vmand %vm663, %vm631
    %v680 = vsel %vm632, 1.0, 0.0
    %v681 = vsel %vm633, 1.0, 0.0
    %v682 = vsel %vm634, 1.0, 0.0
    %v683 = vsel %vm635, 1.0, 0.0
    %v684 = vsel %vm636, 1.0, 0.0
    %v685 = vsel %vm637, 1.0, 0.0
    %v686 = vsel %vm638, 1.0, 0.0
    %v687 = vsel %vm639, 1.0, 0.0
    %v688 = vsel %vm640, 1.0, 0.0
    %v689 = vsel %vm641, 1.0, 0.0
    %v690 = vsel %vm642, 1.0, 0.0
    %v691 = vsel %vm643, 1.0, 0.0
    %v692 = vsel %vm644, 1.0, 0.0
    %v693 = vsel %vm645, 1.0, 0.0
    %v694 = vsel %vm646, 1.0, 0.0
    %v695 = vsel %vm647, 1.0, 0.0
    %696 = vadd.xlane.f32.xlu0 %v680
    %v697 = vpop.xlane.xlu0 %696
    %698 = vadd.xlane.f32.xlu0 %v681
    %v699 = vpop.xlane.xlu0 %698
    %700 = vadd.xlane.f32.xlu0 %v682
    %v701 = vpop.xlane.xlu0 %700
    %702 = vadd.xlane.f32.xlu0 %v683
    %v703 = vpop.xlane.xlu0 %702
    %704 = vadd.xlane.f32.xlu0 %v684
    %v705 = vpop.xlane.xlu0 %704
    %706 = vadd.xlane.f32.xlu0 %v685
    %v707 = vpop.xlane.xlu0 %706
    %708 = vadd.xlane.f32.xlu0 %v686
    %v709 = vpop.xlane.xlu0 %708
    %710 = vadd.xlane.f32.xlu0 %v687
    %v711 = vpop.xlane.xlu0 %710
    %712 = vadd.xlane.f32.xlu0 %v688
    %v713 = vpop.xlane.xlu0 %712
    %714 = vadd.xlane.f32.xlu0 %v689
    %v715 = vpop.xlane.xlu0 %714
    %716 = vadd.xlane.f32.xlu0 %v690
    %v717 = vpop.xlane.xlu0 %716
    %718 = vadd.xlane.f32.xlu0 %v691
    %v719 = vpop.xlane.xlu0 %718
    %720 = vadd.xlane.f32.xlu0 %v692
    %v721 = vpop.xlane.xlu0 %720
    %722 = vadd.xlane.f32.xlu0 %v693
    %v723 = vpop.xlane.xlu0 %722
    %724 = vadd.xlane.f32.xlu0 %v694
    %v725 = vpop.xlane.xlu0 %724
    %726 = vadd.xlane.f32.xlu0 %v695
    %v727 = vpop.xlane.xlu0 %726
    %v728 = vadd.f32 %v680, %v681
    %v729 = vadd.f32 %v728, %v682
    %v730 = vadd.f32 %v729, %v683
    %v731 = vadd.f32 %v730, %v684
    %v732 = vadd.f32 %v731, %v685
    %v733 = vadd.f32 %v732, %v686
    %v734 = vadd.f32 %v733, %v687
    %v735 = vadd.f32 %v734, %v688
    %v736 = vadd.f32 %v735, %v689
    %v737 = vadd.f32 %v736, %v690
    %v738 = vadd.f32 %v737, %v691
    %v739 = vadd.f32 %v738, %v692
    %v740 = vadd.f32 %v739, %v693
    %v741 = vadd.f32 %v740, %v694
    %v742 = vadd.f32 %v741, %v695
    %v743 = vrot.slane %v742, 4
    %v744 = vadd.f32 %v742, %v743
    %v745 = vrot.slane %v744, 2
    %v746 = vadd.f32 %v744, %v745
    %v747 = vrot.slane %v746, 1
    %v748 = vadd.f32 %v746, %v747
    %v749 = vsel %vm410, 1.0, 0.0
    %vm750 = vcmask 1040384
    %v751 = vsel %vm750, %v749, 0.0
    %752 = vadd.xlane.f32.xlu0 %v751
    %v753 = vpop.xlane.xlu0 %752
    %v754 = vrot.slane %v753, 4
    %v755 = vadd.f32 %v753, %v754
    %v756 = vrot.slane %v755, 2
    %v757 = vadd.f32 %v755, %v756
    %v758 = vrot.slane %v757, 1
    %v759 = vadd.f32 %v757, %v758
    %s760 = vtos %v759
    %s761 = ssub.f32 %s760, 1.0
    %v762 = vstv %s761
    %v763 = vsub.f32 %v762, %v697
    %v764 = vsub.f32 %v762, %v699
    %v765 = vsub.f32 %v762, %v701
    %v766 = vsub.f32 %v762, %v703
    %v767 = vsub.f32 %v762, %v705
    %v768 = vsub.f32 %v762, %v707
    %v769 = vsub.f32 %v762, %v709
    %v770 = vsub.f32 %v762, %v711
    %v771 = vsub.f32 %v762, %v713
    %v772 = vsub.f32 %v762, %v715
    %v773 = vsub.f32 %v762, %v717
    %v774 = vsub.f32 %v762, %v719
    %v775 = vsub.f32 %v762, %v721
    %v776 = vsub.f32 %v762, %v723
    %v777 = vsub.f32 %v762, %v725
    %v778 = vsub.f32 %v762, %v727
    %v779 = vsel %vm632, %v345, 0.0
    %v780 = vsel %vm633, %v346, 0.0
    %v781 = vsel %vm634, %v347, 0.0
    %v782 = vsel %vm635, %v348, 0.0
    %v783 = vsel %vm636, %v349, 0.0
    %v784 = vsel %vm637, %v350, 0.0
    %v785 = vsel %vm638, %v351, 0.0
    %v786 = vsel %vm639, %v352, 0.0
    %v787 = vsel %vm640, %v353, 0.0
    %v788 = vsel %vm641, %v354, 0.0
    %v789 = vsel %vm642, %v355, 0.0
    %v790 = vsel %vm643, %v356, 0.0
    %v791 = vsel %vm644, %v357, 0.0
    %v792 = vsel %vm645, %v358, 0.0
    %v793 = vsel %vm646, %v359, 0.0
    %v794 = vsel %vm647, %v360, 0.0
    %795 = vadd.xlane.f32.xlu0 %v779
    %v796 = vpop.xlane.xlu0 %795
    %797 = vadd.xlane.f32.xlu0 %v780
    %v798 = vpop.xlane.xlu0 %797
    %799 = vadd.xlane.f32.xlu0 %v781
    %v800 = vpop.xlane.xlu0 %799
    %801 = vadd.xlane.f32.xlu0 %v782
    %v802 = vpop.xlane.xlu0 %801
    %803 = vadd.xlane.f32.xlu0 %v783
    %v804 = vpop.xlane.xlu0 %803
    %805 = vadd.xlane.f32.xlu0 %v784
    %v806 = vpop.xlane.xlu0 %805
    %807 = vadd.xlane.f32.xlu0 %v785
    %v808 = vpop.xlane.xlu0 %807
    %809 = vadd.xlane.f32.xlu0 %v786
    %v810 = vpop.xlane.xlu0 %809
    %811 = vadd.xlane.f32.xlu0 %v787
    %v812 = vpop.xlane.xlu0 %811
    %813 = vadd.xlane.f32.xlu0 %v788
    %v814 = vpop.xlane.xlu0 %813
    %815 = vadd.xlane.f32.xlu0 %v789
    %v816 = vpop.xlane.xlu0 %815
    %817 = vadd.xlane.f32.xlu0 %v790
    %v818 = vpop.xlane.xlu0 %817
    %819 = vadd.xlane.f32.xlu0 %v791
    %v820 = vpop.xlane.xlu0 %819
    %821 = vadd.xlane.f32.xlu0 %v792
    %v822 = vpop.xlane.xlu0 %821
    %823 = vadd.xlane.f32.xlu0 %v793
    %v824 = vpop.xlane.xlu0 %823
    %825 = vadd.xlane.f32.xlu0 %v794
    %v826 = vpop.xlane.xlu0 %825
    %v827 = vmul.f32 %v136, %v136
    %v828 = vmul.f32 %v137, %v137
    %v829 = vmul.f32 %v138, %v138
    %v830 = vmul.f32 %v139, %v139
    %v831 = vmul.f32 %v140, %v140
    %v832 = vmul.f32 %v141, %v141
    %v833 = vmul.f32 %v142, %v142
    %v834 = vmul.f32 %v143, %v143
    %v835 = vmul.f32 %v144, %v144
    %v836 = vmul.f32 %v145, %v145
    %v837 = vmul.f32 %v146, %v146
    %v838 = vmul.f32 %v147, %v147
    %v839 = vmul.f32 %v148, %v148
    %v840 = vmul.f32 %v149, %v149
    %v841 = vmul.f32 %v150, %v150
    %v842 = vmul.f32 %v151, %v151
    %v843 = vsel %vm55, %v827, 0.0
    %844 = vadd.xlane.f32.xlu0 %v843
    %v845 = vpop.xlane.xlu0 %844
    %v846 = vsel %vm55, %v828, 0.0
    %847 = vadd.xlane.f32.xlu0 %v846
    %v848 = vpop.xlane.xlu0 %847
    %v849 = vsel %vm55, %v829, 0.0
    %850 = vadd.xlane.f32.xlu0 %v849
    %v851 = vpop.xlane.xlu0 %850
    %v852 = vsel %vm55, %v830, 0.0
    %853 = vadd.xlane.f32.xlu0 %v852
    %v854 = vpop.xlane.xlu0 %853
    %v855 = vsel %vm55, %v831, 0.0
    %856 = vadd.xlane.f32.xlu0 %v855
    %v857 = vpop.xlane.xlu0 %856
    %v858 = vsel %vm55, %v832, 0.0
    %859 = vadd.xlane.f32.xlu0 %v858
    %v860 = vpop.xlane.xlu0 %859
    %v861 = vsel %vm55, %v833, 0.0
    %862 = vadd.xlane.f32.xlu0 %v861
    %v863 = vpop.xlane.xlu0 %862
    %v864 = vsel %vm55, %v834, 0.0
    %865 = vadd.xlane.f32.xlu0 %v864
    %v866 = vpop.xlane.xlu0 %865
    %v867 = vsel %vm55, %v835, 0.0
    %868 = vadd.xlane.f32.xlu0 %v867
    %v869 = vpop.xlane.xlu0 %868
    %v870 = vsel %vm55, %v836, 0.0
    %871 = vadd.xlane.f32.xlu0 %v870
    %v872 = vpop.xlane.xlu0 %871
    %v873 = vsel %vm55, %v837, 0.0
    %874 = vadd.xlane.f32.xlu0 %v873
    %v875 = vpop.xlane.xlu0 %874
    %v876 = vsel %vm55, %v838, 0.0
    %877 = vadd.xlane.f32.xlu0 %v876
    %v878 = vpop.xlane.xlu0 %877
    %v879 = vsel %vm55, %v839, 0.0
    %880 = vadd.xlane.f32.xlu0 %v879
    %v881 = vpop.xlane.xlu0 %880
    %v882 = vsel %vm55, %v840, 0.0
    %883 = vadd.xlane.f32.xlu0 %v882
    %v884 = vpop.xlane.xlu0 %883
    %v885 = vsel %vm55, %v841, 0.0
    %886 = vadd.xlane.f32.xlu0 %v885
    %v887 = vpop.xlane.xlu0 %886
    %v888 = vsel %vm55, %v842, 0.0
    %889 = vadd.xlane.f32.xlu0 %v888
    %v890 = vpop.xlane.xlu0 %889
    %v891 = vsub.f32 0.0, %v845
    %v892 = vsub.f32 0.0, %v848
    %v893 = vsub.f32 0.0, %v851
    %v894 = vsub.f32 0.0, %v854
    %v895 = vsub.f32 0.0, %v857
    %v896 = vsub.f32 0.0, %v860
    %v897 = vsub.f32 0.0, %v863
    %v898 = vsub.f32 0.0, %v866
    %v899 = vsub.f32 0.0, %v869
    %v900 = vsub.f32 0.0, %v872
    %v901 = vsub.f32 0.0, %v875
    %v902 = vsub.f32 0.0, %v878
    %v903 = vsub.f32 0.0, %v881
    %v904 = vsub.f32 0.0, %v884
    %v905 = vsub.f32 0.0, %v887
    %v906 = vsub.f32 0.0, %v890
    %907 = vadd.xlane.f32.xlu0 %v345
    %v908 = vpop.xlane.xlu0 %907
    %909 = vadd.xlane.f32.xlu0 %v346
    %v910 = vpop.xlane.xlu0 %909
    %911 = vadd.xlane.f32.xlu0 %v347
    %v912 = vpop.xlane.xlu0 %911
    %913 = vadd.xlane.f32.xlu0 %v348
    %v914 = vpop.xlane.xlu0 %913
    %915 = vadd.xlane.f32.xlu0 %v349
    %v916 = vpop.xlane.xlu0 %915
    %917 = vadd.xlane.f32.xlu0 %v350
    %v918 = vpop.xlane.xlu0 %917
    %919 = vadd.xlane.f32.xlu0 %v351
    %v920 = vpop.xlane.xlu0 %919
    %921 = vadd.xlane.f32.xlu0 %v352
    %v922 = vpop.xlane.xlu0 %921
    %923 = vadd.xlane.f32.xlu0 %v353
    %v924 = vpop.xlane.xlu0 %923
    %925 = vadd.xlane.f32.xlu0 %v354
    %v926 = vpop.xlane.xlu0 %925
    %927 = vadd.xlane.f32.xlu0 %v355
    %v928 = vpop.xlane.xlu0 %927
    %929 = vadd.xlane.f32.xlu0 %v356
    %v930 = vpop.xlane.xlu0 %929
    %931 = vadd.xlane.f32.xlu0 %v357
    %v932 = vpop.xlane.xlu0 %931
    %933 = vadd.xlane.f32.xlu0 %v358
    %v934 = vpop.xlane.xlu0 %933
    %935 = vadd.xlane.f32.xlu0 %v359
    %v936 = vpop.xlane.xlu0 %935
    %937 = vadd.xlane.f32.xlu0 %v360
    %v938 = vpop.xlane.xlu0 %937
    %v939 = vsub.f32 %v908, %v796
    %v940 = vsub.f32 %v910, %v798
    %v941 = vsub.f32 %v912, %v800
    %v942 = vsub.f32 %v914, %v802
    %v943 = vsub.f32 %v916, %v804
    %v944 = vsub.f32 %v918, %v806
    %v945 = vsub.f32 %v920, %v808
    %v946 = vsub.f32 %v922, %v810
    %v947 = vsub.f32 %v924, %v812
    %v948 = vsub.f32 %v926, %v814
    %v949 = vsub.f32 %v928, %v816
    %v950 = vsub.f32 %v930, %v818
    %v951 = vsub.f32 %v932, %v820
    %v952 = vsub.f32 %v934, %v822
    %v953 = vsub.f32 %v936, %v824
    %v954 = vsub.f32 %v938, %v826
    %v955 = vsub.f32 %v939, %v891
    %v956 = vsub.f32 %v940, %v892
    %v957 = vsub.f32 %v941, %v893
    %v958 = vsub.f32 %v942, %v894
    %v959 = vsub.f32 %v943, %v895
    %v960 = vsub.f32 %v944, %v896
    %v961 = vsub.f32 %v945, %v897
    %v962 = vsub.f32 %v946, %v898
    %v963 = vsub.f32 %v947, %v899
    %v964 = vsub.f32 %v948, %v900
    %v965 = vsub.f32 %v949, %v901
    %v966 = vsub.f32 %v950, %v902
    %v967 = vsub.f32 %v951, %v903
    %v968 = vsub.f32 %v952, %v904
    %v969 = vsub.f32 %v953, %v905
    %v970 = vsub.f32 %v954, %v906
    %v971 = vmul.f32 %v697, %v955
    %v972 = vmul.f32 %v699, %v956
    %v973 = vmul.f32 %v701, %v957
    %v974 = vmul.f32 %v703, %v958
    %v975 = vmul.f32 %v705, %v959
    %v976 = vmul.f32 %v707, %v960
    %v977 = vmul.f32 %v709, %v961
    %v978 = vmul.f32 %v711, %v962
    %v979 = vmul.f32 %v713, %v963
    %v980 = vmul.f32 %v715, %v964
    %v981 = vmul.f32 %v717, %v965
    %v982 = vmul.f32 %v719, %v966
    %v983 = vmul.f32 %v721, %v967
    %v984 = vmul.f32 %v723, %v968
    %v985 = vmul.f32 %v725, %v969
    %v986 = vmul.f32 %v727, %v970
    %v987 = vmul.f32 %v763, %v796
    %v988 = vmul.f32 %v764, %v798
    %v989 = vmul.f32 %v765, %v800
    %v990 = vmul.f32 %v766, %v802
    %v991 = vmul.f32 %v767, %v804
    %v992 = vmul.f32 %v768, %v806
    %v993 = vmul.f32 %v769, %v808
    %v994 = vmul.f32 %v770, %v810
    %v995 = vmul.f32 %v771, %v812
    %v996 = vmul.f32 %v772, %v814
    %v997 = vmul.f32 %v773, %v816
    %v998 = vmul.f32 %v774, %v818
    %v999 = vmul.f32 %v775, %v820
    %v1000 = vmul.f32 %v776, %v822
    %v1001 = vmul.f32 %v777, %v824
    %v1002 = vmul.f32 %v778, %v826
    %v1003 = vsub.f32 %v971, %v987
    %v1004 = vsub.f32 %v972, %v988
    %v1005 = vsub.f32 %v973, %v989
    %v1006 = vsub.f32 %v974, %v990
    %v1007 = vsub.f32 %v975, %v991
    %v1008 = vsub.f32 %v976, %v992
    %v1009 = vsub.f32 %v977, %v993
    %v1010 = vsub.f32 %v978, %v994
    %v1011 = vsub.f32 %v979, %v995
    %v1012 = vsub.f32 %v980, %v996
    %v1013 = vsub.f32 %v981, %v997
    %v1014 = vsub.f32 %v982, %v998
    %v1015 = vsub.f32 %v983, %v999
    %v1016 = vsub.f32 %v984, %v1000
    %v1017 = vsub.f32 %v985, %v1001
    %v1018 = vsub.f32 %v986, %v1002
    %vm1019 = vcmask 7168
    %v1020 = vsel %vm1019, %v1003, 0.0
    %v1021 = vsel %vm1019, %v1004, 0.0
    %v1022 = vadd.f32 %v1020, %v1021
    %v1023 = vsel %vm1019, %v1005, 0.0
    %v1024 = vadd.f32 %v1022, %v1023
    %v1025 = vsel %vm1019, %v1006, 0.0
    %v1026 = vadd.f32 %v1024, %v1025
    %v1027 = vsel %vm1019, %v1007, 0.0
    %v1028 = vadd.f32 %v1026, %v1027
    %v1029 = vsel %vm1019, %v1008, 0.0
    %v1030 = vadd.f32 %v1028, %v1029
    %v1031 = vsel %vm1019, %v1009, 0.0
    %v1032 = vadd.f32 %v1030, %v1031
    %v1033 = vsel %vm1019, %v1010, 0.0
    %v1034 = vadd.f32 %v1032, %v1033
    %v1035 = vsel %vm1019, %v1011, 0.0
    %v1036 = vadd.f32 %v1034, %v1035
    %v1037 = vsel %vm1019, %v1012, 0.0
    %v1038 = vadd.f32 %v1036, %v1037
    %v1039 = vsel %vm1019, %v1013, 0.0
    %v1040 = vadd.f32 %v1038, %v1039
    %v1041 = vsel %vm1019, %v1014, 0.0
    %v1042 = vadd.f32 %v1040, %v1041
    %v1043 = vsel %vm1019, %v1015, 0.0
    %v1044 = vadd.f32 %v1042, %v1043
    %v1045 = vsel %vm1019, %v1016, 0.0
    %v1046 = vadd.f32 %v1044, %v1045
    %v1047 = vsel %vm1019, %v1017, 0.0
    %v1048 = vadd.f32 %v1046, %v1047
    %v1049 = vsel %vm1019, %v1018, 0.0
    %v1050 = vadd.f32 %v1048, %v1049
    %1051 = vadd.xlane.f32.xlu0 %v1050
    %v1052 = vpop.xlane.xlu0 %1051
    %v1053 = vrot.slane %v1052, 4
    %v1054 = vadd.f32 %v1052, %v1053
    %v1055 = vrot.slane %v1054, 2
    %v1056 = vadd.f32 %v1054, %v1055
    %v1057 = vrot.slane %v1056, 1
    %v1058 = vadd.f32 %v1056, %v1057
    %s1059 = vtos %v1058
    %v1060 = vmul.f32 %v697, %v763
    %v1061 = vmul.f32 %v699, %v764
    %v1062 = vmul.f32 %v701, %v765
    %v1063 = vmul.f32 %v703, %v766
    %v1064 = vmul.f32 %v705, %v767
    %v1065 = vmul.f32 %v707, %v768
    %v1066 = vmul.f32 %v709, %v769
    %v1067 = vmul.f32 %v711, %v770
    %v1068 = vmul.f32 %v713, %v771
    %v1069 = vmul.f32 %v715, %v772
    %v1070 = vmul.f32 %v717, %v773
    %v1071 = vmul.f32 %v719, %v774
    %v1072 = vmul.f32 %v721, %v775
    %v1073 = vmul.f32 %v723, %v776
    %v1074 = vmul.f32 %v725, %v777
    %v1075 = vmul.f32 %v727, %v778
    %v1076 = vsel %vm1019, %v1060, 0.0
    %v1077 = vsel %vm1019, %v1061, 0.0
    %v1078 = vadd.f32 %v1076, %v1077
    %v1079 = vsel %vm1019, %v1062, 0.0
    %v1080 = vadd.f32 %v1078, %v1079
    %v1081 = vsel %vm1019, %v1063, 0.0
    %v1082 = vadd.f32 %v1080, %v1081
    %v1083 = vsel %vm1019, %v1064, 0.0
    %v1084 = vadd.f32 %v1082, %v1083
    %v1085 = vsel %vm1019, %v1065, 0.0
    %v1086 = vadd.f32 %v1084, %v1085
    %v1087 = vsel %vm1019, %v1066, 0.0
    %v1088 = vadd.f32 %v1086, %v1087
    %v1089 = vsel %vm1019, %v1067, 0.0
    %v1090 = vadd.f32 %v1088, %v1089
    %v1091 = vsel %vm1019, %v1068, 0.0
    %v1092 = vadd.f32 %v1090, %v1091
    %v1093 = vsel %vm1019, %v1069, 0.0
    %v1094 = vadd.f32 %v1092, %v1093
    %v1095 = vsel %vm1019, %v1070, 0.0
    %v1096 = vadd.f32 %v1094, %v1095
    %v1097 = vsel %vm1019, %v1071, 0.0
    %v1098 = vadd.f32 %v1096, %v1097
    %v1099 = vsel %vm1019, %v1072, 0.0
    %v1100 = vadd.f32 %v1098, %v1099
    %v1101 = vsel %vm1019, %v1073, 0.0
    %v1102 = vadd.f32 %v1100, %v1101
    %v1103 = vsel %vm1019, %v1074, 0.0
    %v1104 = vadd.f32 %v1102, %v1103
    %v1105 = vsel %vm1019, %v1075, 0.0
    %v1106 = vadd.f32 %v1104, %v1105
    %1107 = vadd.xlane.f32.xlu0 %v1106
    %v1108 = vpop.xlane.xlu0 %1107
    %v1109 = vrot.slane %v1108, 4
    %v1110 = vadd.f32 %v1108, %v1109
    %v1111 = vrot.slane %v1110, 2
    %v1112 = vadd.f32 %v1110, %v1111
    %v1113 = vrot.slane %v1112, 1
    %v1114 = vadd.f32 %v1112, %v1113
    %s1115 = vtos %v1114
    %s1116 = smax.f32 %s1115, 1.0
    %v1117 = vstv %s1116
    %v1118 = vrcp.pop %v1117
    %s1119 = vtos %v1118
    %s1120 = smul.f32 %s1059, %s1119
    %v1121 = vrcp.pop 2.0
    %s1122 = vtos %v1121
    %s1123 = smul.f32 %s1120, %s1122
    %s1124 = smax.f32 %s1123, 0.0
    %s1125 = smin.f32 %s1124, 0.5
    %v1126 = vstv %s1125
    %vm1127 = vcmask 0
    %1128 = vst.msk [vmem:[#allocation6] sm:$0x1] %vm1127, %v1126
    %vm1129 = vcmp.gt.f32.partialorder %v697, 0.0
    %vm1130 = vcmp.gt.f32.partialorder %v699, 0.0
    %vm1131 = vcmp.gt.f32.partialorder %v701, 0.0
    %vm1132 = vcmp.gt.f32.partialorder %v703, 0.0
    %vm1133 = vcmp.gt.f32.partialorder %v705, 0.0
    %vm1134 = vcmp.gt.f32.partialorder %v707, 0.0
    %vm1135 = vcmp.gt.f32.partialorder %v709, 0.0
    %vm1136 = vcmp.gt.f32.partialorder %v711, 0.0
    %vm1137 = vcmp.gt.f32.partialorder %v713, 0.0
    %vm1138 = vcmp.gt.f32.partialorder %v715, 0.0
    %vm1139 = vcmp.gt.f32.partialorder %v717, 0.0
    %vm1140 = vcmp.gt.f32.partialorder %v719, 0.0
    %vm1141 = vcmp.gt.f32.partialorder %v721, 0.0
    %vm1142 = vcmp.gt.f32.partialorder %v723, 0.0
    %vm1143 = vcmp.gt.f32.partialorder %v725, 0.0
    %vm1144 = vcmp.gt.f32.partialorder %v727, 0.0
    %vm1145 = vcmp.gt.f32.partialorder %v748, 0.0
    %v1146 = vsel %vm1129, 1, 0
    %v1147 = vsel %vm1130, 1, 0
    %v1148 = vsel %vm1131, 1, 0
    %v1149 = vsel %vm1132, 1, 0
    %v1150 = vsel %vm1133, 1, 0
    %v1151 = vsel %vm1134, 1, 0
    %v1152 = vsel %vm1135, 1, 0
    %v1153 = vsel %vm1136, 1, 0
    %v1154 = vsel %vm1137, 1, 0
    %v1155 = vsel %vm1138, 1, 0
    %v1156 = vsel %vm1139, 1, 0
    %v1157 = vsel %vm1140, 1, 0
    %v1158 = vsel %vm1141, 1, 0
    %v1159 = vsel %vm1142, 1, 0
    %v1160 = vsel %vm1143, 1, 0
    %v1161 = vsel %vm1144, 1, 0
    %vm1162 = vcmp.eq.s32.totalorder %v1146, 1
    %vm1163 = vcmp.eq.s32.totalorder %v1147, 1
    %vm1164 = vcmp.eq.s32.totalorder %v1148, 1
    %vm1165 = vcmp.eq.s32.totalorder %v1149, 1
    %vm1166 = vcmp.eq.s32.totalorder %v1150, 1
    %vm1167 = vcmp.eq.s32.totalorder %v1151, 1
    %vm1168 = vcmp.eq.s32.totalorder %v1152, 1
    %vm1169 = vcmp.eq.s32.totalorder %v1153, 1
    %vm1170 = vcmp.eq.s32.totalorder %v1154, 1
    %vm1171 = vcmp.eq.s32.totalorder %v1155, 1
    %vm1172 = vcmp.eq.s32.totalorder %v1156, 1
    %vm1173 = vcmp.eq.s32.totalorder %v1157, 1
    %vm1174 = vcmp.eq.s32.totalorder %v1158, 1
    %vm1175 = vcmp.eq.s32.totalorder %v1159, 1
    %vm1176 = vcmp.eq.s32.totalorder %v1160, 1
    %vm1177 = vcmp.eq.s32.totalorder %v1161, 1
    %v1178 = vsel %vm1145, 1, 0
    %vm1179 = vcmp.eq.s32.totalorder %v1178, 1
    %vm1180 = vmor %vm1162, %vm1179
    %vm1181 = vmor %vm1163, %vm1179
    %vm1182 = vmor %vm1164, %vm1179
    %vm1183 = vmor %vm1165, %vm1179
    %vm1184 = vmor %vm1166, %vm1179
    %vm1185 = vmor %vm1167, %vm1179
    %vm1186 = vmor %vm1168, %vm1179
    %vm1187 = vmor %vm1169, %vm1179
    %vm1188 = vmor %vm1170, %vm1179
    %vm1189 = vmor %vm1171, %vm1179
    %vm1190 = vmor %vm1172, %vm1179
    %vm1191 = vmor %vm1173, %vm1179
    %vm1192 = vmor %vm1174, %vm1179
    %vm1193 = vmor %vm1175, %vm1179
    %vm1194 = vmor %vm1176, %vm1179
    %vm1195 = vmor %vm1177, %vm1179
    %vm1196 = vmand %vm664, %vm1180
    %vm1197 = vmand %vm665, %vm1181
    %vm1198 = vmand %vm666, %vm1182
    %vm1199 = vmand %vm667, %vm1183
    %vm1200 = vmand %vm668, %vm1184
    %vm1201 = vmand %vm669, %vm1185
    %vm1202 = vmand %vm670, %vm1186
    %vm1203 = vmand %vm671, %vm1187
    %vm1204 = vmand %vm672, %vm1188
    %vm1205 = vmand %vm673, %vm1189
    %vm1206 = vmand %vm674, %vm1190
    %vm1207 = vmand %vm675, %vm1191
    %vm1208 = vmand %vm676, %vm1192
    %vm1209 = vmand %vm677, %vm1193
    %vm1210 = vmand %vm678, %vm1194
    %vm1211 = vmand %vm679, %vm1195
    %vm1212 = vcmp.gt.s32.totalorder %v429, %v412
    %vm1213 = vcmp.gt.s32.totalorder %v429, %v413
    %vm1214 = vcmp.gt.s32.totalorder %v429, %v414
    %vm1215 = vcmp.gt.s32.totalorder %v429, %v415
    %vm1216 = vcmp.gt.s32.totalorder %v429, %v416
    %vm1217 = vcmp.gt.s32.totalorder %v429, %v417
    %vm1218 = vcmp.gt.s32.totalorder %v429, %v418
    %vm1219 = vcmp.gt.s32.totalorder %v429, %v419
    %vm1220 = vcmp.gt.s32.totalorder %v429, %v420
    %vm1221 = vcmp.gt.s32.totalorder %v429, %v421
    %vm1222 = vcmp.gt.s32.totalorder %v429, %v422
    %vm1223 = vcmp.gt.s32.totalorder %v429, %v423
    %vm1224 = vcmp.gt.s32.totalorder %v429, %v424
    %vm1225 = vcmp.gt.s32.totalorder %v429, %v425
    %vm1226 = vcmp.gt.s32.totalorder %v429, %v426
    %vm1227 = vcmp.gt.s32.totalorder %v429, %v427
    %vm1228 = vmand %vm1196, %vm1212
    %vm1229 = vmand %vm1197, %vm1213
    %vm1230 = vmand %vm1198, %vm1214
    %vm1231 = vmand %vm1199, %vm1215
    %vm1232 = vmand %vm1200, %vm1216
    %vm1233 = vmand %vm1201, %vm1217
    %vm1234 = vmand %vm1202, %vm1218
    %vm1235 = vmand %vm1203, %vm1219
    %vm1236 = vmand %vm1204, %vm1220
    %vm1237 = vmand %vm1205, %vm1221
    %vm1238 = vmand %vm1206, %vm1222
    %vm1239 = vmand %vm1207, %vm1223
    %vm1240 = vmand %vm1208, %vm1224
    %vm1241 = vmand %vm1209, %vm1225
    %vm1242 = vmand %vm1210, %vm1226
    %vm1243 = vmand %vm1211, %vm1227
    %v1244 = vsel %vm1228, 1.0, 0.0
    %v1245 = vsel %vm1229, 1.0, 0.0
    %v1246 = vsel %vm1230, 1.0, 0.0
    %v1247 = vsel %vm1231, 1.0, 0.0
    %v1248 = vsel %vm1232, 1.0, 0.0
    %v1249 = vsel %vm1233, 1.0, 0.0
    %v1250 = vsel %vm1234, 1.0, 0.0
    %v1251 = vsel %vm1235, 1.0, 0.0
    %v1252 = vsel %vm1236, 1.0, 0.0
    %v1253 = vsel %vm1237, 1.0, 0.0
    %v1254 = vsel %vm1238, 1.0, 0.0
    %v1255 = vsel %vm1239, 1.0, 0.0
    %v1256 = vsel %vm1240, 1.0, 0.0
    %v1257 = vsel %vm1241, 1.0, 0.0
    %v1258 = vsel %vm1242, 1.0, 0.0
    %v1259 = vsel %vm1243, 1.0, 0.0
    %v1260 = vadd.f32 %v1244, %v1245
    %v1261 = vadd.f32 %v1260, %v1246
    %v1262 = vadd.f32 %v1261, %v1247
    %v1263 = vadd.f32 %v1262, %v1248
    %v1264 = vadd.f32 %v1263, %v1249
    %v1265 = vadd.f32 %v1264, %v1250
    %v1266 = vadd.f32 %v1265, %v1251
    %v1267 = vadd.f32 %v1266, %v1252
    %v1268 = vadd.f32 %v1267, %v1253
    %v1269 = vadd.f32 %v1268, %v1254
    %v1270 = vadd.f32 %v1269, %v1255
    %v1271 = vadd.f32 %v1270, %v1256
    %v1272 = vadd.f32 %v1271, %v1257
    %v1273 = vadd.f32 %v1272, %v1258
    %v1274 = vadd.f32 %v1273, %v1259
    %1275 = vadd.xlane.f32.xlu0 %v1274
    %v1276 = vpop.xlane.xlu0 %1275
    %v1277 = vrot.slane %v1276, 4
    %v1278 = vadd.f32 %v1276, %v1277
    %v1279 = vrot.slane %v1278, 2
    %v1280 = vadd.f32 %v1278, %v1279
    %v1281 = vrot.slane %v1280, 1
    %v1282 = vadd.f32 %v1280, %v1281
    %s1283 = vtos %v1282
    %v1284 = vsel %vm1228, %v345, 0.0
    %v1285 = vsel %vm1229, %v346, 0.0
    %v1286 = vsel %vm1230, %v347, 0.0
    %v1287 = vsel %vm1231, %v348, 0.0
    %v1288 = vsel %vm1232, %v349, 0.0
    %v1289 = vsel %vm1233, %v350, 0.0
    %v1290 = vsel %vm1234, %v351, 0.0
    %v1291 = vsel %vm1235, %v352, 0.0
    %v1292 = vsel %vm1236, %v353, 0.0
    %v1293 = vsel %vm1237, %v354, 0.0
    %v1294 = vsel %vm1238, %v355, 0.0
    %v1295 = vsel %vm1239, %v356, 0.0
    %v1296 = vsel %vm1240, %v357, 0.0
    %v1297 = vsel %vm1241, %v358, 0.0
    %v1298 = vsel %vm1242, %v359, 0.0
    %v1299 = vsel %vm1243, %v360, 0.0
    %v1300 = vadd.f32 %v1284, %v1285
    %v1301 = vadd.f32 %v1300, %v1286
    %v1302 = vadd.f32 %v1301, %v1287
    %v1303 = vadd.f32 %v1302, %v1288
    %v1304 = vadd.f32 %v1303, %v1289
    %v1305 = vadd.f32 %v1304, %v1290
    %v1306 = vadd.f32 %v1305, %v1291
    %v1307 = vadd.f32 %v1306, %v1292
    %v1308 = vadd.f32 %v1307, %v1293
    %v1309 = vadd.f32 %v1308, %v1294
    %v1310 = vadd.f32 %v1309, %v1295
    %v1311 = vadd.f32 %v1310, %v1296
    %v1312 = vadd.f32 %v1311, %v1297
    %v1313 = vadd.f32 %v1312, %v1298
    %v1314 = vadd.f32 %v1313, %v1299
    %1315 = vadd.xlane.f32.xlu0 %v1314
    %v1316 = vpop.xlane.xlu0 %1315
    %v1317 = vrot.slane %v1316, 4
    %v1318 = vadd.f32 %v1316, %v1317
    %v1319 = vrot.slane %v1318, 2
    %v1320 = vadd.f32 %v1318, %v1319
    %v1321 = vrot.slane %v1320, 1
    %v1322 = vadd.f32 %v1320, %v1321
    %s1323 = vtos %v1322
    %s1324 = smax.f32 %s1283, 1.0
    %v1325 = vstv %s1324
    %v1326 = vrcp.pop %v1325
    %s1327 = vtos %v1326
    %s1328 = smul.f32 %s1323, %s1327
    %s1329 = ssub.f32 0.0, %s1328
    %s1330 = ssub.f32 %s1329, 1.0
    %v1331 = vrcp.pop 2.0
    %s1332 = vtos %v1331
    %s1333 = smul.f32 %s1330, %s1332
    %s1334 = sadd.f32 %s1333, 1.0
    %v1335 = vstv %s1334
    %1336 = vst.msk [vmem:[#allocation7] sm:$0x1] %vm1127, %v1335
    %v1337 = vsub.f32 0.0, %v345
    %v1338 = vsub.f32 0.0, %v346
    %v1339 = vsub.f32 0.0, %v347
    %v1340 = vsub.f32 0.0, %v348
    %v1341 = vsub.f32 0.0, %v349
    %v1342 = vsub.f32 0.0, %v350
    %v1343 = vsub.f32 0.0, %v351
    %v1344 = vsub.f32 0.0, %v352
    %v1345 = vsub.f32 0.0, %v353
    %v1346 = vsub.f32 0.0, %v354
    %v1347 = vsub.f32 0.0, %v355
    %v1348 = vsub.f32 0.0, %v356
    %v1349 = vsub.f32 0.0, %v357
    %v1350 = vsub.f32 0.0, %v358
    %v1351 = vsub.f32 0.0, %v359
    %v1352 = vsub.f32 0.0, %v360
    %vm1353 = vcmp.ge.f32.partialorder %v1337, %v1335
    %vm1354 = vcmp.ge.f32.partialorder %v1338, %v1335
    %vm1355 = vcmp.ge.f32.partialorder %v1339, %v1335
    %vm1356 = vcmp.ge.f32.partialorder %v1340, %v1335
    %vm1357 = vcmp.ge.f32.partialorder %v1341, %v1335
    %vm1358 = vcmp.ge.f32.partialorder %v1342, %v1335
    %vm1359 = vcmp.ge.f32.partialorder %v1343, %v1335
    %vm1360 = vcmp.ge.f32.partialorder %v1344, %v1335
    %vm1361 = vcmp.ge.f32.partialorder %v1345, %v1335
    %vm1362 = vcmp.ge.f32.partialorder %v1346, %v1335
    %vm1363 = vcmp.ge.f32.partialorder %v1347, %v1335
    %vm1364 = vcmp.ge.f32.partialorder %v1348, %v1335
    %vm1365 = vcmp.ge.f32.partialorder %v1349, %v1335
    %vm1366 = vcmp.ge.f32.partialorder %v1350, %v1335
    %vm1367 = vcmp.ge.f32.partialorder %v1351, %v1335
    %vm1368 = vcmp.ge.f32.partialorder %v1352, %v1335
    %vm1369 = vmand %vm1228, %vm1353
    %vm1370 = vmand %vm1229, %vm1354
    %vm1371 = vmand %vm1230, %vm1355
    %vm1372 = vmand %vm1231, %vm1356
    %vm1373 = vmand %vm1232, %vm1357
    %vm1374 = vmand %vm1233, %vm1358
    %vm1375 = vmand %vm1234, %vm1359
    %vm1376 = vmand %vm1235, %vm1360
    %vm1377 = vmand %vm1236, %vm1361
    %vm1378 = vmand %vm1237, %vm1362
    %vm1379 = vmand %vm1238, %vm1363
    %vm1380 = vmand %vm1239, %vm1364
    %vm1381 = vmand %vm1240, %vm1365
    %vm1382 = vmand %vm1241, %vm1366
    %vm1383 = vmand %vm1242, %vm1367
    %vm1384 = vmand %vm1243, %vm1368
    %vm1385 = vmpackc.low %vm1370, %vm1369
    %vm1386 = vmpackc.low %vm1372, %vm1371
    %vm1387 = vmpackc.even %vm1386, %vm1385
    %vm1388 = vmpackc.low %vm1374, %vm1373
    %vm1389 = vmpackc.low %vm1376, %vm1375
    %vm1390 = vmpackc.even %vm1389, %vm1388
    %vm1391 = vmpackc.low %vm1378, %vm1377
    %vm1392 = vmpackc.low %vm1380, %vm1379
    %vm1393 = vmpackc.even %vm1392, %vm1391
    %vm1394 = vmpackc.low %vm1382, %vm1381
    %vm1395 = vmpackc.low %vm1384, %vm1383
    %vm1396 = vmpackc.even %vm1395, %vm1394
    %v1397 = vsel %vm1387, 16843009, 0
    %v1398 = vsel %vm1390, 16843009, 0
    %v1399 = vsel %vm1393, 16843009, 0
    %v1400 = vsel %vm1396, 16843009, 0
    %1401 = vst [vmem:[#allocation4] sm:$0xff] %v1397
    %1402 = vst [vmem:[#allocation4 + $0x8] sm:$0xff] %v1398
    %1403 = vst [vmem:[#allocation4 + $0x10] sm:$0xff] %v1399
    %1404 = vst [vmem:[#allocation4 + $0x18] sm:$0xff] %v1400
    // Predicated region
    $region14: #{tpu_custom_call.1} parent=1 // pred_check
      _
    $region15: #{tpu_custom_call.1} parent=1 // pred_check_branch
      %1406 = sbr.rel (0) target = $region17
    $region16: #{tpu_custom_call.1} parent=1 // pred_region
      %s1408 = ssub.s32 2048, 2048
      %1409 = vsyncadd [#allocation3], %s1408
      %s1410 = sshll.u32 [#allocation2], 4
      %s1411 = int_to_ptr.vmem [resolvable:$true] %s1410
      %1416 = dma.vmem_to_hbm [thread:$0]  %s1411, 2048, %s3, [#allocation3], 128, 128, 8
    $region17: #{tpu_custom_call.1} parent=1 // pred_fallthru
      _
    // Predicated region
    $region18: #{tpu_custom_call.1} parent=1 // pred_check
      _
    $region19: #{tpu_custom_call.1} parent=1 // pred_check_branch
      %1418 = sbr.rel (0) target = $region21
    $region20: #{tpu_custom_call.1} parent=1 // pred_region
      %s1420 = ssub.s32 512, 512
      %1421 = vsyncadd [#allocation5], %s1420
      %s1422 = sshll.u32 [#allocation4], 4
      %s1423 = int_to_ptr.vmem [resolvable:$true] %s1422
      %1428 = dma.vmem_to_hbm [thread:$0]  %s1423, 512, %s4, [#allocation5], 128, 128, 8
    $region21: #{tpu_custom_call.1} parent=1 // pred_fallthru
      _
    // Predicated region
    $region22: #{tpu_custom_call.1} parent=1 // pred_check
      _
    $region23: #{tpu_custom_call.1} parent=1 // pred_check_branch
      %1430 = sbr.rel (0) target = $region25
    $region24: #{tpu_custom_call.1} parent=1 // pred_region
      %s1432 = ssub.s32 16, 16
      %1433 = vsyncadd [#allocation5], %s1432
      %s1435 = sshll.u32 [#allocation6], 4
      %s1436 = int_to_ptr.vmem [resolvable:$true] %s1435
      %1438 = dma.vmem_to_hbm [thread:$0]  %s1436, 16, %s5, [#allocation5]
    $region25: #{tpu_custom_call.1} parent=1 // pred_fallthru
      _
    // Predicated region
    $region26: #{tpu_custom_call.1} parent=1 // pred_check
      _
    $region27: #{tpu_custom_call.1} parent=1 // pred_check_branch
      %1440 = sbr.rel (0) target = $region29
    $region28: #{tpu_custom_call.1} parent=1 // pred_region
      %s1442 = ssub.s32 16, 16
      %1443 = vsyncadd [#allocation8], %s1442
      %s1445 = sshll.u32 [#allocation7], 4
      %s1446 = int_to_ptr.vmem [resolvable:$true] %s1445
      %1448 = dma.vmem_to_hbm [thread:$0]  %s1446, 16, %s6, [#allocation8]
    $region29: #{tpu_custom_call.1} parent=1 // pred_fallthru
      _
    // Predicated region
    $region30: #{tpu_custom_call.1} parent=1 // pred_check
      _
    $region31: #{tpu_custom_call.1} parent=1 // pred_check_branch
      %1450 = sbr.rel (0) target = $region33
    $region32: #{tpu_custom_call.1} parent=1 // pred_region
      %1451 = dma.done [#allocation3], 2048
    $region33: #{tpu_custom_call.1} parent=1 // pred_fallthru
      _
    // Predicated region
    $region34: #{tpu_custom_call.1} parent=1 // pred_check
      _
    $region35: #{tpu_custom_call.1} parent=1 // pred_check_branch
      %1453 = sbr.rel (0) target = $region37
    $region36: #{tpu_custom_call.1} parent=1 // pred_region
      %1454 = dma.done [#allocation5], 512
    $region37: #{tpu_custom_call.1} parent=1 // pred_fallthru
      _
    // Predicated region
    $region38: #{tpu_custom_call.1} parent=1 // pred_check
      _
    $region39: #{tpu_custom_call.1} parent=1 // pred_check_branch
      %1456 = sbr.rel (0) target = $region41
    $region40: #{tpu_custom_call.1} parent=1 // pred_region
      %1457 = dma.done [#allocation5], 16
    $region41: #{tpu_custom_call.1} parent=1 // pred_fallthru
      _
    // Predicated region
    $region42: #{tpu_custom_call.1} parent=1 // pred_check
      _
    $region43: #{tpu_custom_call.1} parent=1 // pred_check_branch
      %1459 = sbr.rel (0) target = $region45
    $region44: #{tpu_custom_call.1} parent=1 // pred_region
      %1460 = dma.done [#allocation8], 16
    $region45: #{tpu_custom_call.1} parent=1 // pred_fallthru
      _
    %1461 = vsyncpa [#allocation3], 1
    %1462 = vsyncpa [#allocation5], 1
    %1463 = vsyncpa [#allocation8], 1

</llo_original>
